<compile_context>
chip_gen: v7x
topology: tpu7x:2x2x1
jax: 0.10.0
libtpu: 0.0.40
codegen_flags: <defaults>
</compile_context>

<pallas_src>
import jax
import jax.numpy as jnp
from jax import lax
from jax.experimental import pallas as pl
from jax.experimental.pallas import tpu as pltpu


def _make_dcph_lstm_kernel(time_chunk, batch_block, inputdim, hidden,
                           use_bf16_matmul=False, unroll=8):
    TC, BB, D, H = time_chunk, batch_block, inputdim, hidden

    def kernel(x_ref, wih_ref, whh_ref, wexp_ref, out_ref, h_scr, c_scr, gx_scr):
        # Zero the recurrent state at the first time chunk of each batch block.
        @pl.when(pl.program_id(1) == 0)
        def _():
            h_scr[...] = jnp.zeros_like(h_scr)
            c_scr[...] = jnp.zeros_like(c_scr)

        # ---- Hoisted input projection (independent of h): one NaN pass + one MXU call.
        x = x_ref[...]                                   # (TC, BB, D)
        x = jnp.where(jnp.isnan(x), 0.0, x)              # x[isnan(x)] = 0, once per chunk
        x2 = x.reshape(TC * BB, D)
        wih = wih_ref[...]                               # (D, 4H)
        if use_bf16_matmul:
            x2 = x2.astype(jnp.bfloat16)
            wih = wih.astype(jnp.bfloat16)
        gx_scr[...] = jnp.dot(x2, wih, preferred_element_type=jnp.float32)  # (TC*BB, 4H)

        whh = whh_ref[...]                               # (H, 4H)
        if use_bf16_matmul:
            whh = whh.astype(jnp.bfloat16)
        w_exp = wexp_ref[...]                            # (1, H) expert row

        # Constants hoisted out of the loop (JAX does not CSE broadcasts).
        gate_col = lax.broadcasted_iota(jnp.int32, (BB, 4 * H), 1)
        g_mask = (gate_col >= 2 * H) & (gate_col < 3 * H)
        g_scale = jnp.where(g_mask, 2.0, 1.0).astype(jnp.float32)
        out_col = lax.broadcasted_iota(jnp.int32, (BB, TC), 1)

        def step(t, carry):
            h, c, acc = carry
            row = pl.multiple_of(t * BB, BB)
            gates = gx_scr[pl.ds(row, BB), :]            # (BB, 4H) precomputed x-part
            hh = h.astype(jnp.bfloat16) if use_bf16_matmul else h
            gates = gates + jnp.dot(hh, whh, preferred_element_type=jnp.float32)

            # Fused full-vreg nonlinearity: one sigmoid over all 4H gate lanes,
            # recovering the g gate via tanh(x) = 2*sigmoid(2x) - 1 on the VPU.
            s = jax.nn.sigmoid(gates * g_scale)
            act = jnp.where(g_mask, 2.0 * s - 1.0, s)

            i_g = act[:, 0 * H:1 * H]
            f_g = act[:, 1 * H:2 * H]
            g_g = act[:, 2 * H:3 * H]
            o_g = act[:, 3 * H:4 * H]

            c = f_g * c + i_g * g_g
            h = o_g * jnp.tanh(c)

            # Expert head ReLU6(h) . w_expert for this step, accumulated into a
            # lane-dense (BB, TC) tile (no per-step narrow store, no transpose).
            score = jnp.sum(jnp.clip(h, 0.0, 6.0) * w_exp, axis=-1, keepdims=True)
            acc = jnp.where(out_col == t, score, acc)
            return h, c, acc

        h0 = h_scr[...]
        c0 = c_scr[...]
        acc0 = jnp.zeros((BB, TC), jnp.float32)
        h, c, acc = lax.fori_loop(0, TC, step, (h0, c0, acc0),
                                  unroll=min(unroll, TC))

        h_scr[...] = h                                   # carry state to next chunk
        c_scr[...] = c
        out_ref[...] = acc                               # one lane-dense (BB, TC) store

    return kernel


def dcph_forward_pallas(x, w_ih, w_hh, w_expert, *, time_chunk=None,
                        batch_block=None, use_bf16_matmul=False, unroll=8):
    """x: (B, T, D) float32 (NaN marks missing steps).
    w_ih: (4H, D), w_hh: (4H, H), w_expert: (1, H)  -- PyTorch parameter layouts.
    Returns (n_valid, 1) float32, matching the PyTorch module output.
    """
    B, T, D = x.shape
    H = w_hh.shape[1]
    assert w_ih.shape == (4 * H, D) and w_hh.shape == (4 * H, H)
    assert w_expert.shape == (1, H)

    TC = T if time_chunk is None else time_chunk
    assert T % TC == 0, "time_chunk must tile T"
    B_pad = max(8, -(-B // 8) * 8)               # fill vreg sublanes
    BB = B_pad if batch_block is None else batch_block
    assert B_pad % BB == 0 and BB % 8 == 0

    # Valid-step mask from the ORIGINAL input (row order b*T + t, as in PyTorch).
    inputmask = ~jnp.isnan(x[:, :, 0]).reshape(-1)

    # Time-major, batch-padded layout for the recurrence: (T, B_pad, D).
    x_tm = jnp.transpose(x, (1, 0, 2))
    if B_pad != B:
        x_tm = jnp.pad(x_tm, ((0, 0), (0, B_pad - B), (0, 0)))

    wih_t = jnp.transpose(w_ih)                  # (D, 4H)
    whh_t = jnp.transpose(w_hh)                  # (H, 4H)

    kernel = _make_dcph_lstm_kernel(TC, BB, D, H, use_bf16_matmul, unroll)

    out = pl.pallas_call(
        kernel,
        out_shape=jax.ShapeDtypeStruct((B_pad, T), jnp.float32),   # lane-dense (batch, time)
        grid_spec=pltpu.PrefetchScalarGridSpec(
            num_scalar_prefetch=0,
            # (batch blocks, time chunks): batch blocks are independent
            # ("parallel" -> both TCs on v7x); the time axis carries h/c
            # scratch state and must stay "arbitrary" (sequential).
            grid=(B_pad // BB, T // TC),
            in_specs=[
                pl.BlockSpec((TC, BB, D), lambda b, c: (c, b, 0)),    # x chunk
                pl.BlockSpec((D, 4 * H), lambda b, c: (0, 0)),        # W_ih^T (constant)
                pl.BlockSpec((H, 4 * H), lambda b, c: (0, 0)),        # W_hh^T (constant)
                pl.BlockSpec((1, H), lambda b, c: (0, 0)),            # W_expert (1, H)
            ],
            out_specs=pl.BlockSpec((BB, TC), lambda b, c: (b, c)),
            scratch_shapes=[
                pltpu.VMEM((BB, H), jnp.float32),           # h state (persists over chunks)
                pltpu.VMEM((BB, H), jnp.float32),           # c state
                pltpu.VMEM((TC * BB, 4 * H), jnp.float32),  # hoisted x @ W_ih^T slab
            ],
        ),
        compiler_params=pltpu.CompilerParams(
            dimension_semantics=("parallel", "arbitrary"),
            # TODO(synk): when scaling T/B/H, re-derive TC against chip VMEM
            # (v7x: 64 MiB) and set vmem_limit_bytes explicitly; pick TC a
            # multiple of 128 so the (BB, TC) output store stays unmasked.
        ),
    )(x_tm, wih_t, whh_t, w_expert)

    # (B_pad, T) -> dense (B*T,) scores already in PyTorch row order b*T + t,
    # then the data-dependent boolean row selection.  Dynamic output shape ->
    # plain eager JAX (not jit-able as-is; return (scores, mask) if jitting).
    scores = out[:B, :].reshape(B * T)
    return scores[inputmask][:, None]


# ----------------------- pure-JAX reference (for validation) -----------------------
def dcph_forward_ref(x, w_ih, w_hh, w_expert):
    B, T, D = x.shape
    H = w_hh.shape[1]
    inputmask = ~jnp.isnan(x[:, :, 0]).reshape(-1)
    xz = jnp.where(jnp.isnan(x), 0.0, x)

    def step(carry, xt):
        h, c = carry
        gates = xt @ w_ih.T + h @ w_hh.T
        i, f, g, o = jnp.split(gates, 4, axis=-1)
        i, f, g, o = jax.nn.sigmoid(i), jax.nn.sigmoid(f), jnp.tanh(g), jax.nn.sigmoid(o)
        c = f * c + i * g
        h = o * jnp.tanh(c)
        return (h, c), h

    x_tm = jnp.transpose(xz, (1, 0, 2))
    (_, _), hs = jax.lax.scan(step, (jnp.zeros((B, H)), jnp.zeros((B, H))), x_tm)
    xrep = jnp.transpose(hs, (1, 0, 2)).reshape(B * T, H)
    xrep = jnp.clip(xrep, 0.0, 6.0)[inputmask]
    return jnp.sum(xrep * w_expert[0], axis=-1, keepdims=True)


if __name__ == "__main__":
    B, T, D, H = 4, 8, 16, 32   # batch, seq len, inputdim, hidden

    key = jax.random.PRNGKey(0)
    kx, kih, khh, kexp = jax.random.split(key, 4)

    # Input with some NaN-padded (missing) timesteps, as the module expects.
    x = jax.random.normal(kx, (B, T, D), dtype=jnp.float32)
    x = x.at[0, 6:, :].set(jnp.nan)     # sequence 0 has only 6 valid steps
    x = x.at[2, 3:, :].set(jnp.nan)     # sequence 2 has only 3 valid steps

    # Deterministic parameter init (PyTorch-style uniform(-1/sqrt(H), 1/sqrt(H))).
    bound = 1.0 / jnp.sqrt(jnp.float32(H))
    w_ih = jax.random.uniform(kih, (4 * H, D), jnp.float32, -bound, bound)
    w_hh = jax.random.uniform(khh, (4 * H, H), jnp.float32, -bound, bound)
    w_expert = jax.random.uniform(kexp, (1, H), jnp.float32, -bound, bound)

    out = dcph_forward_pallas(x, w_ih, w_hh, w_expert)
    out = jax.block_until_ready(out)

    ref = jax.block_until_ready(dcph_forward_ref(x, w_ih, w_hh, w_expert))

    assert out.shape == ref.shape, (out.shape, ref.shape)
    assert jnp.allclose(out, ref, atol=1e-4, rtol=1e-4), float(jnp.max(jnp.abs(out - ref)))

    print("KERNEL_OK")
</pallas_src>

<mosaic_0001>
module attributes {stable_mosaic.version = 11 : i64} {
  func.func @kernel(%arg0: i32, %arg1: i32, %arg2: memref<8x8x16xf32, #tpu.memory_space<vmem>>, %arg3: memref<16x128xf32, #tpu.memory_space<vmem>>, %arg4: memref<32x128xf32, #tpu.memory_space<vmem>>, %arg5: memref<1x32xf32, #tpu.memory_space<vmem>>, %arg6: memref<8x8xf32, #tpu.memory_space<vmem>>, %arg7: memref<8x32xf32, #tpu.memory_space<vmem>>, %arg8: memref<8x32xf32, #tpu.memory_space<vmem>>, %arg9: memref<64x128xf32, #tpu.memory_space<vmem>>) attributes {dimension_semantics = [#tpu.dimension_semantics<parallel>, #tpu.dimension_semantics<arbitrary>], iteration_bounds = array<i64: 1, 1>, scalar_prefetch = 0 : i64, scratch_operands = 3 : i64, tpu.core_type = #tpu.core_type<tc>, window_params = [{transform_indices = @transform_0, window_bounds = array<i64: 8, 8, 16>}, {pipeline_mode = #tpu.pipeline_mode<synchronous>, transform_indices = @transform_1, window_bounds = array<i64: 16, 128>}, {pipeline_mode = #tpu.pipeline_mode<synchronous>, transform_indices = @transform_2, window_bounds = array<i64: 32, 128>}, {pipeline_mode = #tpu.pipeline_mode<synchronous>, transform_indices = @transform_3, window_bounds = array<i64: 1, 32>}, {transform_indices = @transform_4, window_bounds = array<i64: 8, 8>}]} {
    %c0_i32 = arith.constant 0 : i32
    %0 = arith.cmpi eq, %arg1, %c0_i32 : i32
    %1 = arith.extui %0 : i1 to i32
    %c0_i32_0 = arith.constant 0 : i32
    %2 = arith.cmpi ne, %1, %c0_i32_0 : i32
    scf.if %2 {
      %cst_98 = arith.constant 0.000000e+00 : f32
      %341 = vector.broadcast %cst_98 : f32 to vector<8x32xf32>
      %c0_99 = arith.constant 0 : index
      %c0_100 = arith.constant 0 : index
      %342 = vector.load %arg7[%c0_99, %c0_100] : memref<8x32xf32, #tpu.memory_space<vmem>>, vector<8x32xf32>
      tpu.vector_store %arg7[%c0_99, %c0_100], %341 {strides = array<i32>} : memref<8x32xf32, #tpu.memory_space<vmem>>, vector<8x32xf32>,
      %cst_101 = arith.constant 0.000000e+00 : f32
      %343 = vector.broadcast %cst_101 : f32 to vector<8x32xf32>
      %c0_102 = arith.constant 0 : index
      %c0_103 = arith.constant 0 : index
      %344 = vector.load %arg8[%c0_102, %c0_103] : memref<8x32xf32, #tpu.memory_space<vmem>>, vector<8x32xf32>
      tpu.vector_store %arg8[%c0_102, %c0_103], %343 {strides = array<i32>} : memref<8x32xf32, #tpu.memory_space<vmem>>, vector<8x32xf32>,
    } else {
    }
    %c0 = arith.constant 0 : index
    %c0_1 = arith.constant 0 : index
    %c0_2 = arith.constant 0 : index
    %3 = vector.load %arg2[%c0, %c0_1, %c0_2] : memref<8x8x16xf32, #tpu.memory_space<vmem>>, vector<8x8x16xf32>
    %4 = arith.cmpf one, %3, %3 : vector<8x8x16xf32>
    %cst = arith.constant 0.000000e+00 : f32
    %5 = vector.broadcast %cst : f32 to vector<8x8x16xf32>
    %6 = arith.select %4, %5, %3 : vector<8x8x16xi1>, vector<8x8x16xf32>
    %7 = vector.shape_cast %6 : vector<8x8x16xf32> to vector<64x16xf32>
    %c0_3 = arith.constant 0 : index
    %c0_4 = arith.constant 0 : index
    %8 = vector.load %arg3[%c0_3, %c0_4] : memref<16x128xf32, #tpu.memory_space<vmem>>, vector<16x128xf32>
    %cst_5 = arith.constant dense<0.000000e+00> : vector<64x128xf32>
    %9 = tpu.matmul %7, %8, %cst_5 {dimension_numbers = #tpu.dot_dimension_numbers<[1], [0], [0], [1], [0, 0, 1, 1], [], []>} : vector<64x16xf32>, vector<16x128xf32>, vector<64x128xf32> -> vector<64x128xf32>
    %c0_6 = arith.constant 0 : index
    %c0_7 = arith.constant 0 : index
    %10 = vector.load %arg9[%c0_6, %c0_7] : memref<64x128xf32, #tpu.memory_space<vmem>>, vector<64x128xf32>
    tpu.vector_store %arg9[%c0_6, %c0_7], %9 {strides = array<i32>} : memref<64x128xf32, #tpu.memory_space<vmem>>, vector<64x128xf32>,
    %c0_8 = arith.constant 0 : index
    %c0_9 = arith.constant 0 : index
    %11 = vector.load %arg4[%c0_8, %c0_9] : memref<32x128xf32, #tpu.memory_space<vmem>>, vector<32x128xf32>
    %c0_10 = arith.constant 0 : index
    %c0_11 = arith.constant 0 : index
    %12 = vector.load %arg5[%c0_10, %c0_11] : memref<1x32xf32, #tpu.memory_space<vmem>>, vector<1x32xf32>
    %13 = tpu.iota {dimensions = array<i32: 1>} : vector<8x128xi32>
    %c64_i32 = arith.constant 64 : i32
    %14 = vector.broadcast %c64_i32 : i32 to vector<8x128xi32>
    %15 = arith.cmpi sge, %13, %14 : vector<8x128xi32>
    %c96_i32 = arith.constant 96 : i32
    %16 = vector.broadcast %c96_i32 : i32 to vector<8x128xi32>
    %17 = arith.cmpi slt, %13, %16 : vector<8x128xi32>
    %18 = arith.andi %15, %17 : vector<8x128xi1>
    %cst_12 = arith.constant 2.000000e+00 : f32
    %cst_13 = arith.constant 1.000000e+00 : f32
    %19 = vector.broadcast %cst_12 : f32 to vector<8x128xf32>
    %20 = vector.broadcast %cst_13 : f32 to vector<8x128xf32>
    %21 = arith.select %18, %19, %20 : vector<8x128xi1>, vector<8x128xf32>
    %22 = tpu.iota {dimensions = array<i32: 1>} : vector<8x8xi32>
    %c0_14 = arith.constant 0 : index
    %c0_15 = arith.constant 0 : index
    %23 = vector.load %arg7[%c0_14, %c0_15] : memref<8x32xf32, #tpu.memory_space<vmem>>, vector<8x32xf32>
    %c0_16 = arith.constant 0 : index
    %c0_17 = arith.constant 0 : index
    %24 = vector.load %arg8[%c0_16, %c0_17] : memref<8x32xf32, #tpu.memory_space<vmem>>, vector<8x32xf32>
    %cst_18 = arith.constant 0.000000e+00 : f32
    %25 = vector.broadcast %cst_18 : f32 to vector<8x8xf32>
    %c0_i32_19 = arith.constant 0 : i32
    %c8_i32 = arith.constant 8 : i32
    %26 = arith.muli %c0_i32_19, %c8_i32 : i32
    %27 = tpu.assume_multiple %26, 8 : i32
    %28 = arith.index_cast %27 : i32 to index
    %c0_20 = arith.constant 0 : index
    %29 = vector.load %arg9[%28, %c0_20] : memref<64x128xf32, #tpu.memory_space<vmem>>, vector<8x128xf32>
    %cst_21 = arith.constant dense<0.000000e+00> : vector<8x128xf32>
    %30 = tpu.matmul %23, %11, %cst_21 {dimension_numbers = #tpu.dot_dimension_numbers<[1], [0], [0], [1], [0, 0, 1, 1], [], []>} : vector<8x32xf32>, vector<32x128xf32>, vector<8x128xf32> -> vector<8x128xf32>
    %31 = arith.addf %29, %30 : vector<8x128xf32>
    %32 = arith.mulf %31, %21 : vector<8x128xf32>
    %33 = arith.negf %32 : vector<8x128xf32>
    %34 = math.exp %33 : vector<8x128xf32>
    %cst_22 = arith.constant 1.000000e+00 : f32
    %35 = vector.broadcast %cst_22 : f32 to vector<8x128xf32>
    %36 = arith.addf %35, %34 : vector<8x128xf32>
    %37 = arith.divf %35, %36 : vector<8x128xf32>
    %cst_23 = arith.constant 2.000000e+00 : f32
    %38 = vector.broadcast %cst_23 : f32 to vector<8x128xf32>
    %39 = arith.mulf %38, %37 : vector<8x128xf32>
    %cst_24 = arith.constant 1.000000e+00 : f32
    %40 = vector.broadcast %cst_24 : f32 to vector<8x128xf32>
    %41 = arith.subf %39, %40 : vector<8x128xf32>
    %42 = arith.select %18, %41, %37 : vector<8x128xi1>, vector<8x128xf32>
    %43 = vector.extract_strided_slice %42 {offsets = [0, 0], sizes = [8, 32], strides = [1, 1]} : vector<8x128xf32> to vector<8x32xf32>
    %44 = vector.extract_strided_slice %42 {offsets = [0, 32], sizes = [8, 32], strides = [1, 1]} : vector<8x128xf32> to vector<8x32xf32>
    %45 = vector.extract_strided_slice %42 {offsets = [0, 64], sizes = [8, 32], strides = [1, 1]} : vector<8x128xf32> to vector<8x32xf32>
    %46 = vector.extract_strided_slice %42 {offsets = [0, 96], sizes = [8, 32], strides = [1, 1]} : vector<8x128xf32> to vector<8x32xf32>
    %47 = arith.mulf %44, %24 : vector<8x32xf32>
    %48 = arith.mulf %43, %45 : vector<8x32xf32>
    %49 = arith.addf %47, %48 : vector<8x32xf32>
    %50 = math.tanh %49 : vector<8x32xf32>
    %51 = arith.mulf %46, %50 : vector<8x32xf32>
    %cst_25 = arith.constant 0.000000e+00 : f32
    %cst_26 = arith.constant 6.000000e+00 : f32
    %52 = vector.broadcast %cst_25 : f32 to vector<8x32xf32>
    %53 = arith.maximumf %52, %51 : vector<8x32xf32>
    %54 = vector.broadcast %cst_26 : f32 to vector<8x32xf32>
    %55 = arith.minimumf %54, %53 : vector<8x32xf32>
    %56 = vector.broadcast %12 : vector<1x32xf32> to vector<8x32xf32>
    %57 = arith.mulf %55, %56 : vector<8x32xf32>
    %cst_27 = arith.constant dense<0.000000e+00> : vector<8xf32>
    %58 = vector.multi_reduction <add>, %57, %cst_27 [1] : vector<8x32xf32> to vector<8xf32>
    %59 = vector.shape_cast %58 : vector<8xf32> to vector<8x1xf32>
    %60 = vector.broadcast %c0_i32_19 : i32 to vector<8x8xi32>
    %61 = arith.cmpi eq, %22, %60 : vector<8x8xi32>
    %62 = vector.shape_cast %59 : vector<8x1xf32> to vector<8x1xf32>
    %63 = vector.broadcast %62 : vector<8x1xf32> to vector<8x8xf32>
    %64 = arith.select %61, %63, %25 : vector<8x8xi1>, vector<8x8xf32>
    %c1_i32 = arith.constant 1 : i32
    %c8_i32_28 = arith.constant 8 : i32
    %65 = arith.muli %c1_i32, %c8_i32_28 : i32
    %66 = tpu.assume_multiple %65, 8 : i32
    %67 = arith.index_cast %66 : i32 to index
    %c0_29 = arith.constant 0 : index
    %68 = vector.load %arg9[%67, %c0_29] : memref<64x128xf32, #tpu.memory_space<vmem>>, vector<8x128xf32>
    %cst_30 = arith.constant dense<0.000000e+00> : vector<8x128xf32>
    %69 = tpu.matmul %51, %11, %cst_30 {dimension_numbers = #tpu.dot_dimension_numbers<[1], [0], [0], [1], [0, 0, 1, 1], [], []>} : vector<8x32xf32>, vector<32x128xf32>, vector<8x128xf32> -> vector<8x128xf32>
    %70 = arith.addf %68, %69 : vector<8x128xf32>
    %71 = arith.mulf %70, %21 : vector<8x128xf32>
    %72 = arith.negf %71 : vector<8x128xf32>
    %73 = math.exp %72 : vector<8x128xf32>
    %cst_31 = arith.constant 1.000000e+00 : f32
    %74 = vector.broadcast %cst_31 : f32 to vector<8x128xf32>
    %75 = arith.addf %74, %73 : vector<8x128xf32>
    %76 = arith.divf %74, %75 : vector<8x128xf32>
    %cst_32 = arith.constant 2.000000e+00 : f32
    %77 = vector.broadcast %cst_32 : f32 to vector<8x128xf32>
    %78 = arith.mulf %77, %76 : vector<8x128xf32>
    %cst_33 = arith.constant 1.000000e+00 : f32
    %79 = vector.broadcast %cst_33 : f32 to vector<8x128xf32>
    %80 = arith.subf %78, %79 : vector<8x128xf32>
    %81 = arith.select %18, %80, %76 : vector<8x128xi1>, vector<8x128xf32>
    %82 = vector.extract_strided_slice %81 {offsets = [0, 0], sizes = [8, 32], strides = [1, 1]} : vector<8x128xf32> to vector<8x32xf32>
    %83 = vector.extract_strided_slice %81 {offsets = [0, 32], sizes = [8, 32], strides = [1, 1]} : vector<8x128xf32> to vector<8x32xf32>
    %84 = vector.extract_strided_slice %81 {offsets = [0, 64], sizes = [8, 32], strides = [1, 1]} : vector<8x128xf32> to vector<8x32xf32>
    %85 = vector.extract_strided_slice %81 {offsets = [0, 96], sizes = [8, 32], strides = [1, 1]} : vector<8x128xf32> to vector<8x32xf32>
    %86 = arith.mulf %83, %49 : vector<8x32xf32>
    %87 = arith.mulf %82, %84 : vector<8x32xf32>
    %88 = arith.addf %86, %87 : vector<8x32xf32>
    %89 = math.tanh %88 : vector<8x32xf32>
    %90 = arith.mulf %85, %89 : vector<8x32xf32>
    %cst_34 = arith.constant 0.000000e+00 : f32
    %cst_35 = arith.constant 6.000000e+00 : f32
    %91 = vector.broadcast %cst_34 : f32 to vector<8x32xf32>
    %92 = arith.maximumf %91, %90 : vector<8x32xf32>
    %93 = vector.broadcast %cst_35 : f32 to vector<8x32xf32>
    %94 = arith.minimumf %93, %92 : vector<8x32xf32>
    %95 = vector.broadcast %12 : vector<1x32xf32> to vector<8x32xf32>
    %96 = arith.mulf %94, %95 : vector<8x32xf32>
    %cst_36 = arith.constant dense<0.000000e+00> : vector<8xf32>
    %97 = vector.multi_reduction <add>, %96, %cst_36 [1] : vector<8x32xf32> to vector<8xf32>
    %98 = vector.shape_cast %97 : vector<8xf32> to vector<8x1xf32>
    %99 = vector.broadcast %c1_i32 : i32 to vector<8x8xi32>
    %100 = arith.cmpi eq, %22, %99 : vector<8x8xi32>
    %101 = vector.shape_cast %98 : vector<8x1xf32> to vector<8x1xf32>
    %102 = vector.broadcast %101 : vector<8x1xf32> to vector<8x8xf32>
    %103 = arith.select %100, %102, %64 : vector<8x8xi1>, vector<8x8xf32>
    %c2_i32 = arith.constant 2 : i32
    %c8_i32_37 = arith.constant 8 : i32
    %104 = arith.muli %c2_i32, %c8_i32_37 : i32
    %105 = tpu.assume_multiple %104, 8 : i32
    %106 = arith.index_cast %105 : i32 to index
    %c0_38 = arith.constant 0 : index
    %107 = vector.load %arg9[%106, %c0_38] : memref<64x128xf32, #tpu.memory_space<vmem>>, vector<8x128xf32>
    %cst_39 = arith.constant dense<0.000000e+00> : vector<8x128xf32>
    %108 = tpu.matmul %90, %11, %cst_39 {dimension_numbers = #tpu.dot_dimension_numbers<[1], [0], [0], [1], [0, 0, 1, 1], [], []>} : vector<8x32xf32>, vector<32x128xf32>, vector<8x128xf32> -> vector<8x128xf32>
    %109 = arith.addf %107, %108 : vector<8x128xf32>
    %110 = arith.mulf %109, %21 : vector<8x128xf32>
    %111 = arith.negf %110 : vector<8x128xf32>
    %112 = math.exp %111 : vector<8x128xf32>
    %cst_40 = arith.constant 1.000000e+00 : f32
    %113 = vector.broadcast %cst_40 : f32 to vector<8x128xf32>
    %114 = arith.addf %113, %112 : vector<8x128xf32>
    %115 = arith.divf %113, %114 : vector<8x128xf32>
    %cst_41 = arith.constant 2.000000e+00 : f32
    %116 = vector.broadcast %cst_41 : f32 to vector<8x128xf32>
    %117 = arith.mulf %116, %115 : vector<8x128xf32>
    %cst_42 = arith.constant 1.000000e+00 : f32
    %118 = vector.broadcast %cst_42 : f32 to vector<8x128xf32>
    %119 = arith.subf %117, %118 : vector<8x128xf32>
    %120 = arith.select %18, %119, %115 : vector<8x128xi1>, vector<8x128xf32>
    %121 = vector.extract_strided_slice %120 {offsets = [0, 0], sizes = [8, 32], strides = [1, 1]} : vector<8x128xf32> to vector<8x32xf32>
    %122 = vector.extract_strided_slice %120 {offsets = [0, 32], sizes = [8, 32], strides = [1, 1]} : vector<8x128xf32> to vector<8x32xf32>
    %123 = vector.extract_strided_slice %120 {offsets = [0, 64], sizes = [8, 32], strides = [1, 1]} : vector<8x128xf32> to vector<8x32xf32>
    %124 = vector.extract_strided_slice %120 {offsets = [0, 96], sizes = [8, 32], strides = [1, 1]} : vector<8x128xf32> to vector<8x32xf32>
    %125 = arith.mulf %122, %88 : vector<8x32xf32>
    %126 = arith.mulf %121, %123 : vector<8x32xf32>
    %127 = arith.addf %125, %126 : vector<8x32xf32>
    %128 = math.tanh %127 : vector<8x32xf32>
    %129 = arith.mulf %124, %128 : vector<8x32xf32>
    %cst_43 = arith.constant 0.000000e+00 : f32
    %cst_44 = arith.constant 6.000000e+00 : f32
    %130 = vector.broadcast %cst_43 : f32 to vector<8x32xf32>
    %131 = arith.maximumf %130, %129 : vector<8x32xf32>
    %132 = vector.broadcast %cst_44 : f32 to vector<8x32xf32>
    %133 = arith.minimumf %132, %131 : vector<8x32xf32>
    %134 = vector.broadcast %12 : vector<1x32xf32> to vector<8x32xf32>
    %135 = arith.mulf %133, %134 : vector<8x32xf32>
    %cst_45 = arith.constant dense<0.000000e+00> : vector<8xf32>
    %136 = vector.multi_reduction <add>, %135, %cst_45 [1] : vector<8x32xf32> to vector<8xf32>
    %137 = vector.shape_cast %136 : vector<8xf32> to vector<8x1xf32>
    %138 = vector.broadcast %c2_i32 : i32 to vector<8x8xi32>
    %139 = arith.cmpi eq, %22, %138 : vector<8x8xi32>
    %140 = vector.shape_cast %137 : vector<8x1xf32> to vector<8x1xf32>
    %141 = vector.broadcast %140 : vector<8x1xf32> to vector<8x8xf32>
    %142 = arith.select %139, %141, %103 : vector<8x8xi1>, vector<8x8xf32>
    %c3_i32 = arith.constant 3 : i32
    %c8_i32_46 = arith.constant 8 : i32
    %143 = arith.muli %c3_i32, %c8_i32_46 : i32
    %144 = tpu.assume_multiple %143, 8 : i32
    %145 = arith.index_cast %144 : i32 to index
    %c0_47 = arith.constant 0 : index
    %146 = vector.load %arg9[%145, %c0_47] : memref<64x128xf32, #tpu.memory_space<vmem>>, vector<8x128xf32>
    %cst_48 = arith.constant dense<0.000000e+00> : vector<8x128xf32>
    %147 = tpu.matmul %129, %11, %cst_48 {dimension_numbers = #tpu.dot_dimension_numbers<[1], [0], [0], [1], [0, 0, 1, 1], [], []>} : vector<8x32xf32>, vector<32x128xf32>, vector<8x128xf32> -> vector<8x128xf32>
    %148 = arith.addf %146, %147 : vector<8x128xf32>
    %149 = arith.mulf %148, %21 : vector<8x128xf32>
    %150 = arith.negf %149 : vector<8x128xf32>
    %151 = math.exp %150 : vector<8x128xf32>
    %cst_49 = arith.constant 1.000000e+00 : f32
    %152 = vector.broadcast %cst_49 : f32 to vector<8x128xf32>
    %153 = arith.addf %152, %151 : vector<8x128xf32>
    %154 = arith.divf %152, %153 : vector<8x128xf32>
    %cst_50 = arith.constant 2.000000e+00 : f32
    %155 = vector.broadcast %cst_50 : f32 to vector<8x128xf32>
    %156 = arith.mulf %155, %154 : vector<8x128xf32>
    %cst_51 = arith.constant 1.000000e+00 : f32
    %157 = vector.broadcast %cst_51 : f32 to vector<8x128xf32>
    %158 = arith.subf %156, %157 : vector<8x128xf32>
    %159 = arith.select %18, %158, %154 : vector<8x128xi1>, vector<8x128xf32>
    %160 = vector.extract_strided_slice %159 {offsets = [0, 0], sizes = [8, 32], strides = [1, 1]} : vector<8x128xf32> to vector<8x32xf32>
    %161 = vector.extract_strided_slice %159 {offsets = [0, 32], sizes = [8, 32], strides = [1, 1]} : vector<8x128xf32> to vector<8x32xf32>
    %162 = vector.extract_strided_slice %159 {offsets = [0, 64], sizes = [8, 32], strides = [1, 1]} : vector<8x128xf32> to vector<8x32xf32>
    %163 = vector.extract_strided_slice %159 {offsets = [0, 96], sizes = [8, 32], strides = [1, 1]} : vector<8x128xf32> to vector<8x32xf32>
    %164 = arith.mulf %161, %127 : vector<8x32xf32>
    %165 = arith.mulf %160, %162 : vector<8x32xf32>
    %166 = arith.addf %164, %165 : vector<8x32xf32>
    %167 = math.tanh %166 : vector<8x32xf32>
    %168 = arith.mulf %163, %167 : vector<8x32xf32>
    %cst_52 = arith.constant 0.000000e+00 : f32
    %cst_53 = arith.constant 6.000000e+00 : f32
    %169 = vector.broadcast %cst_52 : f32 to vector<8x32xf32>
    %170 = arith.maximumf %169, %168 : vector<8x32xf32>
    %171 = vector.broadcast %cst_53 : f32 to vector<8x32xf32>
    %172 = arith.minimumf %171, %170 : vector<8x32xf32>
    %173 = vector.broadcast %12 : vector<1x32xf32> to vector<8x32xf32>
    %174 = arith.mulf %172, %173 : vector<8x32xf32>
    %cst_54 = arith.constant dense<0.000000e+00> : vector<8xf32>
    %175 = vector.multi_reduction <add>, %174, %cst_54 [1] : vector<8x32xf32> to vector<8xf32>
    %176 = vector.shape_cast %175 : vector<8xf32> to vector<8x1xf32>
    %177 = vector.broadcast %c3_i32 : i32 to vector<8x8xi32>
    %178 = arith.cmpi eq, %22, %177 : vector<8x8xi32>
    %179 = vector.shape_cast %176 : vector<8x1xf32> to vector<8x1xf32>
    %180 = vector.broadcast %179 : vector<8x1xf32> to vector<8x8xf32>
    %181 = arith.select %178, %180, %142 : vector<8x8xi1>, vector<8x8xf32>
    %c4_i32 = arith.constant 4 : i32
    %c8_i32_55 = arith.constant 8 : i32
    %182 = arith.muli %c4_i32, %c8_i32_55 : i32
    %183 = tpu.assume_multiple %182, 8 : i32
    %184 = arith.index_cast %183 : i32 to index
    %c0_56 = arith.constant 0 : index
    %185 = vector.load %arg9[%184, %c0_56] : memref<64x128xf32, #tpu.memory_space<vmem>>, vector<8x128xf32>
    %cst_57 = arith.constant dense<0.000000e+00> : vector<8x128xf32>
    %186 = tpu.matmul %168, %11, %cst_57 {dimension_numbers = #tpu.dot_dimension_numbers<[1], [0], [0], [1], [0, 0, 1, 1], [], []>} : vector<8x32xf32>, vector<32x128xf32>, vector<8x128xf32> -> vector<8x128xf32>
    %187 = arith.addf %185, %186 : vector<8x128xf32>
    %188 = arith.mulf %187, %21 : vector<8x128xf32>
    %189 = arith.negf %188 : vector<8x128xf32>
    %190 = math.exp %189 : vector<8x128xf32>
    %cst_58 = arith.constant 1.000000e+00 : f32
    %191 = vector.broadcast %cst_58 : f32 to vector<8x128xf32>
    %192 = arith.addf %191, %190 : vector<8x128xf32>
    %193 = arith.divf %191, %192 : vector<8x128xf32>
    %cst_59 = arith.constant 2.000000e+00 : f32
    %194 = vector.broadcast %cst_59 : f32 to vector<8x128xf32>
    %195 = arith.mulf %194, %193 : vector<8x128xf32>
    %cst_60 = arith.constant 1.000000e+00 : f32
    %196 = vector.broadcast %cst_60 : f32 to vector<8x128xf32>
    %197 = arith.subf %195, %196 : vector<8x128xf32>
    %198 = arith.select %18, %197, %193 : vector<8x128xi1>, vector<8x128xf32>
    %199 = vector.extract_strided_slice %198 {offsets = [0, 0], sizes = [8, 32], strides = [1, 1]} : vector<8x128xf32> to vector<8x32xf32>
    %200 = vector.extract_strided_slice %198 {offsets = [0, 32], sizes = [8, 32], strides = [1, 1]} : vector<8x128xf32> to vector<8x32xf32>
    %201 = vector.extract_strided_slice %198 {offsets = [0, 64], sizes = [8, 32], strides = [1, 1]} : vector<8x128xf32> to vector<8x32xf32>
    %202 = vector.extract_strided_slice %198 {offsets = [0, 96], sizes = [8, 32], strides = [1, 1]} : vector<8x128xf32> to vector<8x32xf32>
    %203 = arith.mulf %200, %166 : vector<8x32xf32>
    %204 = arith.mulf %199, %201 : vector<8x32xf32>
    %205 = arith.addf %203, %204 : vector<8x32xf32>
    %206 = math.tanh %205 : vector<8x32xf32>
    %207 = arith.mulf %202, %206 : vector<8x32xf32>
    %cst_61 = arith.constant 0.000000e+00 : f32
    %cst_62 = arith.constant 6.000000e+00 : f32
    %208 = vector.broadcast %cst_61 : f32 to vector<8x32xf32>
    %209 = arith.maximumf %208, %207 : vector<8x32xf32>
    %210 = vector.broadcast %cst_62 : f32 to vector<8x32xf32>
    %211 = arith.minimumf %210, %209 : vector<8x32xf32>
    %212 = vector.broadcast %12 : vector<1x32xf32> to vector<8x32xf32>
    %213 = arith.mulf %211, %212 : vector<8x32xf32>
    %cst_63 = arith.constant dense<0.000000e+00> : vector<8xf32>
    %214 = vector.multi_reduction <add>, %213, %cst_63 [1] : vector<8x32xf32> to vector<8xf32>
    %215 = vector.shape_cast %214 : vector<8xf32> to vector<8x1xf32>
    %216 = vector.broadcast %c4_i32 : i32 to vector<8x8xi32>
    %217 = arith.cmpi eq, %22, %216 : vector<8x8xi32>
    %218 = vector.shape_cast %215 : vector<8x1xf32> to vector<8x1xf32>
    %219 = vector.broadcast %218 : vector<8x1xf32> to vector<8x8xf32>
    %220 = arith.select %217, %219, %181 : vector<8x8xi1>, vector<8x8xf32>
    %c5_i32 = arith.constant 5 : i32
    %c8_i32_64 = arith.constant 8 : i32
    %221 = arith.muli %c5_i32, %c8_i32_64 : i32
    %222 = tpu.assume_multiple %221, 8 : i32
    %223 = arith.index_cast %222 : i32 to index
    %c0_65 = arith.constant 0 : index
    %224 = vector.load %arg9[%223, %c0_65] : memref<64x128xf32, #tpu.memory_space<vmem>>, vector<8x128xf32>
    %cst_66 = arith.constant dense<0.000000e+00> : vector<8x128xf32>
    %225 = tpu.matmul %207, %11, %cst_66 {dimension_numbers = #tpu.dot_dimension_numbers<[1], [0], [0], [1], [0, 0, 1, 1], [], []>} : vector<8x32xf32>, vector<32x128xf32>, vector<8x128xf32> -> vector<8x128xf32>
    %226 = arith.addf %224, %225 : vector<8x128xf32>
    %227 = arith.mulf %226, %21 : vector<8x128xf32>
    %228 = arith.negf %227 : vector<8x128xf32>
    %229 = math.exp %228 : vector<8x128xf32>
    %cst_67 = arith.constant 1.000000e+00 : f32
    %230 = vector.broadcast %cst_67 : f32 to vector<8x128xf32>
    %231 = arith.addf %230, %229 : vector<8x128xf32>
    %232 = arith.divf %230, %231 : vector<8x128xf32>
    %cst_68 = arith.constant 2.000000e+00 : f32
    %233 = vector.broadcast %cst_68 : f32 to vector<8x128xf32>
    %234 = arith.mulf %233, %232 : vector<8x128xf32>
    %cst_69 = arith.constant 1.000000e+00 : f32
    %235 = vector.broadcast %cst_69 : f32 to vector<8x128xf32>
    %236 = arith.subf %234, %235 : vector<8x128xf32>
    %237 = arith.select %18, %236, %232 : vector<8x128xi1>, vector<8x128xf32>
    %238 = vector.extract_strided_slice %237 {offsets = [0, 0], sizes = [8, 32], strides = [1, 1]} : vector<8x128xf32> to vector<8x32xf32>
    %239 = vector.extract_strided_slice %237 {offsets = [0, 32], sizes = [8, 32], strides = [1, 1]} : vector<8x128xf32> to vector<8x32xf32>
    %240 = vector.extract_strided_slice %237 {offsets = [0, 64], sizes = [8, 32], strides = [1, 1]} : vector<8x128xf32> to vector<8x32xf32>
    %241 = vector.extract_strided_slice %237 {offsets = [0, 96], sizes = [8, 32], strides = [1, 1]} : vector<8x128xf32> to vector<8x32xf32>
    %242 = arith.mulf %239, %205 : vector<8x32xf32>
    %243 = arith.mulf %238, %240 : vector<8x32xf32>
    %244 = arith.addf %242, %243 : vector<8x32xf32>
    %245 = math.tanh %244 : vector<8x32xf32>
    %246 = arith.mulf %241, %245 : vector<8x32xf32>
    %cst_70 = arith.constant 0.000000e+00 : f32
    %cst_71 = arith.constant 6.000000e+00 : f32
    %247 = vector.broadcast %cst_70 : f32 to vector<8x32xf32>
    %248 = arith.maximumf %247, %246 : vector<8x32xf32>
    %249 = vector.broadcast %cst_71 : f32 to vector<8x32xf32>
    %250 = arith.minimumf %249, %248 : vector<8x32xf32>
    %251 = vector.broadcast %12 : vector<1x32xf32> to vector<8x32xf32>
    %252 = arith.mulf %250, %251 : vector<8x32xf32>
    %cst_72 = arith.constant dense<0.000000e+00> : vector<8xf32>
    %253 = vector.multi_reduction <add>, %252, %cst_72 [1] : vector<8x32xf32> to vector<8xf32>
    %254 = vector.shape_cast %253 : vector<8xf32> to vector<8x1xf32>
    %255 = vector.broadcast %c5_i32 : i32 to vector<8x8xi32>
    %256 = arith.cmpi eq, %22, %255 : vector<8x8xi32>
    %257 = vector.shape_cast %254 : vector<8x1xf32> to vector<8x1xf32>
    %258 = vector.broadcast %257 : vector<8x1xf32> to vector<8x8xf32>
    %259 = arith.select %256, %258, %220 : vector<8x8xi1>, vector<8x8xf32>
    %c6_i32 = arith.constant 6 : i32
    %c8_i32_73 = arith.constant 8 : i32
    %260 = arith.muli %c6_i32, %c8_i32_73 : i32
    %261 = tpu.assume_multiple %260, 8 : i32
    %262 = arith.index_cast %261 : i32 to index
    %c0_74 = arith.constant 0 : index
    %263 = vector.load %arg9[%262, %c0_74] : memref<64x128xf32, #tpu.memory_space<vmem>>, vector<8x128xf32>
    %cst_75 = arith.constant dense<0.000000e+00> : vector<8x128xf32>
    %264 = tpu.matmul %246, %11, %cst_75 {dimension_numbers = #tpu.dot_dimension_numbers<[1], [0], [0], [1], [0, 0, 1, 1], [], []>} : vector<8x32xf32>, vector<32x128xf32>, vector<8x128xf32> -> vector<8x128xf32>
    %265 = arith.addf %263, %264 : vector<8x128xf32>
    %266 = arith.mulf %265, %21 : vector<8x128xf32>
    %267 = arith.negf %266 : vector<8x128xf32>
    %268 = math.exp %267 : vector<8x128xf32>
    %cst_76 = arith.constant 1.000000e+00 : f32
    %269 = vector.broadcast %cst_76 : f32 to vector<8x128xf32>
    %270 = arith.addf %269, %268 : vector<8x128xf32>
    %271 = arith.divf %269, %270 : vector<8x128xf32>
    %cst_77 = arith.constant 2.000000e+00 : f32
    %272 = vector.broadcast %cst_77 : f32 to vector<8x128xf32>
    %273 = arith.mulf %272, %271 : vector<8x128xf32>
    %cst_78 = arith.constant 1.000000e+00 : f32
    %274 = vector.broadcast %cst_78 : f32 to vector<8x128xf32>
    %275 = arith.subf %273, %274 : vector<8x128xf32>
    %276 = arith.select %18, %275, %271 : vector<8x128xi1>, vector<8x128xf32>
    %277 = vector.extract_strided_slice %276 {offsets = [0, 0], sizes = [8, 32], strides = [1, 1]} : vector<8x128xf32> to vector<8x32xf32>
    %278 = vector.extract_strided_slice %276 {offsets = [0, 32], sizes = [8, 32], strides = [1, 1]} : vector<8x128xf32> to vector<8x32xf32>
    %279 = vector.extract_strided_slice %276 {offsets = [0, 64], sizes = [8, 32], strides = [1, 1]} : vector<8x128xf32> to vector<8x32xf32>
    %280 = vector.extract_strided_slice %276 {offsets = [0, 96], sizes = [8, 32], strides = [1, 1]} : vector<8x128xf32> to vector<8x32xf32>
    %281 = arith.mulf %278, %244 : vector<8x32xf32>
    %282 = arith.mulf %277, %279 : vector<8x32xf32>
    %283 = arith.addf %281, %282 : vector<8x32xf32>
    %284 = math.tanh %283 : vector<8x32xf32>
    %285 = arith.mulf %280, %284 : vector<8x32xf32>
    %cst_79 = arith.constant 0.000000e+00 : f32
    %cst_80 = arith.constant 6.000000e+00 : f32
    %286 = vector.broadcast %cst_79 : f32 to vector<8x32xf32>
    %287 = arith.maximumf %286, %285 : vector<8x32xf32>
    %288 = vector.broadcast %cst_80 : f32 to vector<8x32xf32>
    %289 = arith.minimumf %288, %287 : vector<8x32xf32>
    %290 = vector.broadcast %12 : vector<1x32xf32> to vector<8x32xf32>
    %291 = arith.mulf %289, %290 : vector<8x32xf32>
    %cst_81 = arith.constant dense<0.000000e+00> : vector<8xf32>
    %292 = vector.multi_reduction <add>, %291, %cst_81 [1] : vector<8x32xf32> to vector<8xf32>
    %293 = vector.shape_cast %292 : vector<8xf32> to vector<8x1xf32>
    %294 = vector.broadcast %c6_i32 : i32 to vector<8x8xi32>
    %295 = arith.cmpi eq, %22, %294 : vector<8x8xi32>
    %296 = vector.shape_cast %293 : vector<8x1xf32> to vector<8x1xf32>
    %297 = vector.broadcast %296 : vector<8x1xf32> to vector<8x8xf32>
    %298 = arith.select %295, %297, %259 : vector<8x8xi1>, vector<8x8xf32>
    %c7_i32 = arith.constant 7 : i32
    %c8_i32_82 = arith.constant 8 : i32
    %299 = arith.muli %c7_i32, %c8_i32_82 : i32
    %300 = tpu.assume_multiple %299, 8 : i32
    %301 = arith.index_cast %300 : i32 to index
    %c0_83 = arith.constant 0 : index
    %302 = vector.load %arg9[%301, %c0_83] : memref<64x128xf32, #tpu.memory_space<vmem>>, vector<8x128xf32>
    %cst_84 = arith.constant dense<0.000000e+00> : vector<8x128xf32>
    %303 = tpu.matmul %285, %11, %cst_84 {dimension_numbers = #tpu.dot_dimension_numbers<[1], [0], [0], [1], [0, 0, 1, 1], [], []>} : vector<8x32xf32>, vector<32x128xf32>, vector<8x128xf32> -> vector<8x128xf32>
    %304 = arith.addf %302, %303 : vector<8x128xf32>
    %305 = arith.mulf %304, %21 : vector<8x128xf32>
    %306 = arith.negf %305 : vector<8x128xf32>
    %307 = math.exp %306 : vector<8x128xf32>
    %cst_85 = arith.constant 1.000000e+00 : f32
    %308 = vector.broadcast %cst_85 : f32 to vector<8x128xf32>
    %309 = arith.addf %308, %307 : vector<8x128xf32>
    %310 = arith.divf %308, %309 : vector<8x128xf32>
    %cst_86 = arith.constant 2.000000e+00 : f32
    %311 = vector.broadcast %cst_86 : f32 to vector<8x128xf32>
    %312 = arith.mulf %311, %310 : vector<8x128xf32>
    %cst_87 = arith.constant 1.000000e+00 : f32
    %313 = vector.broadcast %cst_87 : f32 to vector<8x128xf32>
    %314 = arith.subf %312, %313 : vector<8x128xf32>
    %315 = arith.select %18, %314, %310 : vector<8x128xi1>, vector<8x128xf32>
    %316 = vector.extract_strided_slice %315 {offsets = [0, 0], sizes = [8, 32], strides = [1, 1]} : vector<8x128xf32> to vector<8x32xf32>
    %317 = vector.extract_strided_slice %315 {offsets = [0, 32], sizes = [8, 32], strides = [1, 1]} : vector<8x128xf32> to vector<8x32xf32>
    %318 = vector.extract_strided_slice %315 {offsets = [0, 64], sizes = [8, 32], strides = [1, 1]} : vector<8x128xf32> to vector<8x32xf32>
    %319 = vector.extract_strided_slice %315 {offsets = [0, 96], sizes = [8, 32], strides = [1, 1]} : vector<8x128xf32> to vector<8x32xf32>
    %320 = arith.mulf %317, %283 : vector<8x32xf32>
    %321 = arith.mulf %316, %318 : vector<8x32xf32>
    %322 = arith.addf %320, %321 : vector<8x32xf32>
    %323 = math.tanh %322 : vector<8x32xf32>
    %324 = arith.mulf %319, %323 : vector<8x32xf32>
    %cst_88 = arith.constant 0.000000e+00 : f32
    %cst_89 = arith.constant 6.000000e+00 : f32
    %325 = vector.broadcast %cst_88 : f32 to vector<8x32xf32>
    %326 = arith.maximumf %325, %324 : vector<8x32xf32>
    %327 = vector.broadcast %cst_89 : f32 to vector<8x32xf32>
    %328 = arith.minimumf %327, %326 : vector<8x32xf32>
    %329 = vector.broadcast %12 : vector<1x32xf32> to vector<8x32xf32>
    %330 = arith.mulf %328, %329 : vector<8x32xf32>
    %cst_90 = arith.constant dense<0.000000e+00> : vector<8xf32>
    %331 = vector.multi_reduction <add>, %330, %cst_90 [1] : vector<8x32xf32> to vector<8xf32>
    %332 = vector.shape_cast %331 : vector<8xf32> to vector<8x1xf32>
    %333 = vector.broadcast %c7_i32 : i32 to vector<8x8xi32>
    %334 = arith.cmpi eq, %22, %333 : vector<8x8xi32>
    %335 = vector.shape_cast %332 : vector<8x1xf32> to vector<8x1xf32>
    %336 = vector.broadcast %335 : vector<8x1xf32> to vector<8x8xf32>
    %337 = arith.select %334, %336, %298 : vector<8x8xi1>, vector<8x8xf32>
    %c8_i32_91 = arith.constant 8 : i32
    %c0_92 = arith.constant 0 : index
    %c0_93 = arith.constant 0 : index
    %338 = vector.load %arg7[%c0_92, %c0_93] : memref<8x32xf32, #tpu.memory_space<vmem>>, vector<8x32xf32>
    tpu.vector_store %arg7[%c0_92, %c0_93], %324 {strides = array<i32>} : memref<8x32xf32, #tpu.memory_space<vmem>>, vector<8x32xf32>,
    %c0_94 = arith.constant 0 : index
    %c0_95 = arith.constant 0 : index
    %339 = vector.load %arg8[%c0_94, %c0_95] : memref<8x32xf32, #tpu.memory_space<vmem>>, vector<8x32xf32>
    tpu.vector_store %arg8[%c0_94, %c0_95], %322 {strides = array<i32>} : memref<8x32xf32, #tpu.memory_space<vmem>>, vector<8x32xf32>,
    %c0_96 = arith.constant 0 : index
    %c0_97 = arith.constant 0 : index
    %340 = vector.load %arg6[%c0_96, %c0_97] : memref<8x8xf32, #tpu.memory_space<vmem>>, vector<8x8xf32>
    tpu.vector_store %arg6[%c0_96, %c0_97], %337 {strides = array<i32>} : memref<8x8xf32, #tpu.memory_space<vmem>>, vector<8x8xf32>,
    return
  }
  func.func @transform_0(%arg0: i32, %arg1: i32) -> (i32, i32, i32) {
    %c0_i32 = arith.constant 0 : i32
    %c0_i32_0 = arith.constant 0 : i32
    return %arg1, %arg0, %c0_i32 : i32, i32, i32
  }
  func.func @transform_1(%arg0: i32, %arg1: i32) -> (i32, i32) {
    %c0_i32 = arith.constant 0 : i32
    %c0_i32_0 = arith.constant 0 : i32
    %c0_i32_1 = arith.constant 0 : i32
    return %c0_i32, %c0_i32_0 : i32, i32
  }
  func.func @transform_2(%arg0: i32, %arg1: i32) -> (i32, i32) {
    %c0_i32 = arith.constant 0 : i32
    %c0_i32_0 = arith.constant 0 : i32
    %c0_i32_1 = arith.constant 0 : i32
    return %c0_i32, %c0_i32_0 : i32, i32
  }
  func.func @transform_3(%arg0: i32, %arg1: i32) -> (i32, i32) {
    %c0_i32 = arith.constant 0 : i32
    %c0_i32_0 = arith.constant 0 : i32
    %c0_i32_1 = arith.constant 0 : i32
    return %c0_i32, %c0_i32_0 : i32, i32
  }
  func.func @transform_4(%arg0: i32, %arg1: i32) -> (i32, i32) {
    %c0_i32 = arith.constant 0 : i32
    return %arg0, %arg1 : i32, i32
  }
}

</mosaic_0001>

<llo_original>
// kernel: tpu_custom_call.1
$region0: #{tpu_custom_call.1}
  #allocation0 [shape = 'u32[]', space=smem, size = 0x4, offset = 0x4, fixed_abs, tag = 'smem constant byte address 0x4 - core index']
  #allocation1 [shape = 'u32[144,128]{1,0:T(1,128)}', space=vmem, size = 0x12000, scoped, tag = 'internal scratch']
  #allocation2 [shape = 'f32[8,32]{1,0:T(8,128)}', space=vmem, size = 0x1000, scoped, tag = 'scratch operand']
  #allocation3 [shape = 'f32[8,32]{1,0:T(8,128)}', space=vmem, size = 0x1000, scoped, tag = 'scratch operand']
  #allocation4 [shape = 'f32[64,128]{1,0:T(8,128)}', space=vmem, size = 0x8000, scoped, tag = 'scratch operand']
  %s0 = inlined_call_operand.hbm [shape: f32[8,8,16], index: 0, kind: input, shape index: {}]
  %s1 = inlined_call_operand.hbm [shape: f32[16,128], index: 1, kind: input, shape index: {}]
  %s2 = inlined_call_operand.hbm [shape: f32[32,128], index: 2, kind: input, shape index: {}]
  %s3 = inlined_call_operand.vmem [shape: f32[1,32], index: 3, kind: input, shape index: {}]
  %s4 = inlined_call_operand.hbm [shape: f32[8,8], index: 4, kind: output, shape index: {}]
  %s5 = sld [smem:[#allocation0]]
  $region42: #{tpu_custom_call.1} parent=0
    _
  %s7 = ssub.s32 1, %s5
  %s8 = scalar_select 0, %s7, %s5
  $region1: #{tpu_custom_call.1} parent=0
    #allocation5 [shape = 'u8[32768]{0}', space=vmem, size = 0x8000, scoped, tag = 'input window, operand 0, single buffered']
    #allocation6 [shape = 's32[1]{0}', space=sflag, size = 0x4, scoped, tag = 'scoped memory for tpu_custom_call.1']
    #allocation7 [shape = 's32[1]{0}', space=sflag, size = 0x4, scoped, tag = 'scoped memory for tpu_custom_call.1']
    #allocation8 [shape = 'u8[8192]{0}', space=vmem, size = 0x2000, scoped, tag = 'input window, operand 1, single buffered']
    #allocation9 [shape = 's32[1]{0}', space=sflag, size = 0x4, scoped, tag = 'scoped memory for tpu_custom_call.1']
    #allocation10 [shape = 'u8[16384]{0}', space=vmem, size = 0x4000, scoped, tag = 'input window, operand 2, single buffered']
    #allocation11 [shape = 'u8[4096]{0}', space=vmem, size = 0x1000, scoped, tag = 'output window, operand 0, single buffered']
    %9 = vsyncpa [#allocation6], 0
    %10 = vsyncpa [#allocation9], 0
    %11 = vsyncpa [#allocation7], 0
    // Predicated region
    $region2: #{tpu_custom_call.1} parent=1 // pred_check
      _
    $region3: #{tpu_custom_call.1} parent=1 // pred_check_branch
      %13 = sbr.rel (0) target = $region5
    $region4: #{tpu_custom_call.1} parent=1 // pred_region
      %s15 = ssub.s32 1024, 1024
      %16 = vsyncadd [#allocation6], %s15
      %s17 = sshll.u32 [#allocation5], 4
      %s18 = int_to_ptr.vmem [resolvable:$true] %s17
      %23 = dma.hbm_to_vmem [thread:$0]  %s0, 1024, %s18, [#allocation6], 128, 128, 8
    $region5: #{tpu_custom_call.1} parent=1 // pred_fallthru
      _
    // Predicated region
    $region6: #{tpu_custom_call.1} parent=1 // pred_check
      _
    $region7: #{tpu_custom_call.1} parent=1 // pred_check_branch
      %25 = sbr.rel (0) target = $region9
    $region8: #{tpu_custom_call.1} parent=1 // pred_region
      %s27 = ssub.s32 256, 256
      %28 = vsyncadd [#allocation9], %s27
      %s29 = sshll.u32 [#allocation8], 4
      %s30 = int_to_ptr.vmem [resolvable:$true] %s29
      %35 = dma.hbm_to_vmem [thread:$0]  %s1, 256, %s30, [#allocation9], 128, 128, 8
    $region9: #{tpu_custom_call.1} parent=1 // pred_fallthru
      _
    // Predicated region
    $region10: #{tpu_custom_call.1} parent=1 // pred_check
      _
    $region11: #{tpu_custom_call.1} parent=1 // pred_check_branch
      %37 = sbr.rel (0) target = $region13
    $region12: #{tpu_custom_call.1} parent=1 // pred_region
      %s39 = ssub.s32 512, 512
      %40 = vsyncadd [#allocation9], %s39
      %s41 = sshll.u32 [#allocation10], 4
      %s42 = int_to_ptr.vmem [resolvable:$true] %s41
      %47 = dma.hbm_to_vmem [thread:$0]  %s2, 512, %s42, [#allocation9], 128, 128, 8
    $region13: #{tpu_custom_call.1} parent=1 // pred_fallthru
      _
    // Predicated region
    $region14: #{tpu_custom_call.1} parent=1 // pred_check
      _
    $region15: #{tpu_custom_call.1} parent=1 // pred_check_branch
      %49 = sbr.rel (0) target = $region17
    $region16: #{tpu_custom_call.1} parent=1 // pred_region
      _
    $region17: #{tpu_custom_call.1} parent=1 // pred_fallthru
      _
    // Predicated region
    $region18: #{tpu_custom_call.1} parent=1 // pred_check
      _
    $region19: #{tpu_custom_call.1} parent=1 // pred_check_branch
      %51 = sbr.rel (0) target = $region21
    $region20: #{tpu_custom_call.1} parent=1 // pred_region
      %52 = dma.done [#allocation6], 1024
    $region21: #{tpu_custom_call.1} parent=1 // pred_fallthru
      _
    // Predicated region
    $region22: #{tpu_custom_call.1} parent=1 // pred_check
      _
    $region23: #{tpu_custom_call.1} parent=1 // pred_check_branch
      %54 = sbr.rel (0) target = $region25
    $region24: #{tpu_custom_call.1} parent=1 // pred_region
      %55 = dma.done [#allocation9], 256
    $region25: #{tpu_custom_call.1} parent=1 // pred_fallthru
      _
    // Predicated region
    $region26: #{tpu_custom_call.1} parent=1 // pred_check
      _
    $region27: #{tpu_custom_call.1} parent=1 // pred_check_branch
      %57 = sbr.rel (0) target = $region29
    $region28: #{tpu_custom_call.1} parent=1 // pred_region
      %58 = dma.done [#allocation9], 512
    $region29: #{tpu_custom_call.1} parent=1 // pred_fallthru
      _
    %p59 = scmp.eq.s32.totalorder 0, 0
    // Predicated region
    $region30: #{tpu_custom_call.1} parent=1 // pred_check
      %p60 = pneg %p59
    $region31: #{tpu_custom_call.1} parent=1 // pred_check_branch
      %62 = sbr.rel (%p60) target = $region33
    $region32: #{tpu_custom_call.1} parent=1 // pred_region
      %vm63 = vcmask 261120
      %64 = vst.msk [vmem:[#allocation2] sm:$0xff] %vm63, 0.0
      %65 = vst.msk [vmem:[#allocation3] sm:$0xff] %vm63, 0.0
    $region33: #{tpu_custom_call.1} parent=1 // pred_fallthru
      _
    %v66 = vld [vmem:[#allocation5] sm:$0xff]
    %v67 = vld [vmem:[#allocation5 + $0x8] sm:$0xff]
    %v68 = vld [vmem:[#allocation5 + $0x10] sm:$0xff]
    %v69 = vld [vmem:[#allocation5 + $0x18] sm:$0xff]
    %v70 = vld [vmem:[#allocation5 + $0x20] sm:$0xff]
    %v71 = vld [vmem:[#allocation5 + $0x28] sm:$0xff]
    %v72 = vld [vmem:[#allocation5 + $0x30] sm:$0xff]
    %v73 = vld [vmem:[#allocation5 + $0x38] sm:$0xff]
    %vm74 = vcmp.ne.f32.partialorder %v66, %v66
    %vm75 = vcmp.ne.f32.partialorder %v67, %v67
    %vm76 = vcmp.ne.f32.partialorder %v68, %v68
    %vm77 = vcmp.ne.f32.partialorder %v69, %v69
    %vm78 = vcmp.ne.f32.partialorder %v70, %v70
    %vm79 = vcmp.ne.f32.partialorder %v71, %v71
    %vm80 = vcmp.ne.f32.partialorder %v72, %v72
    %vm81 = vcmp.ne.f32.partialorder %v73, %v73
    %v82 = vsel %vm74, 0.0, %v66
    %v83 = vsel %vm75, 0.0, %v67
    %v84 = vsel %vm76, 0.0, %v68
    %v85 = vsel %vm77, 0.0, %v69
    %v86 = vsel %vm78, 0.0, %v70
    %v87 = vsel %vm79, 0.0, %v71
    %v88 = vsel %vm80, 0.0, %v72
    %v89 = vsel %vm81, 0.0, %v73
    %v90 = vld [vmem:[#allocation8] sm:$0xff]
    %v91 = vld [vmem:[#allocation8 + $0x8] sm:$0xff]
    %vm92 = vcmask 130048
    %v94 = vsel %vm92, %v82, 0
    %v97 = vsel %vm92, %v83, 0
    %v100 = vsel %vm92, %v84, 0
    %v103 = vsel %vm92, %v85, 0
    %v106 = vsel %vm92, %v86, 0
    %v109 = vsel %vm92, %v87, 0
    %v112 = vsel %vm92, %v88, 0
    %v115 = vsel %vm92, %v89, 0
    %117 = vmatprep.subr.mxu0 0.0
    %118 = vmatpush1.msra.mxu0 %v90
    %119 = vmatprep.subr.mxu0 0.0
    %120 = vmatpush1.msra.mxu0 %v91
    %121 = vmatprep.subr.mxu0 0.0
    %122 = vmatpush1.msra.mxu0 0.0
    %123 = vmatprep.subr.mxu0 0.0
    %124 = vmatpush1.msra.mxu0 0.0
    %125 = vmatprep.subr.mxu0 0.0
    %126 = vmatpush1.msra.mxu0 0.0
    %127 = vmatprep.subr.mxu0 0.0
    %128 = vmatpush1.msra.mxu0 0.0
    %129 = vmatprep.subr.mxu0 0.0
    %130 = vmatpush1.msra.mxu0 0.0
    %131 = vmatprep.subr.mxu0 0.0
    %132 = vmatpush1.msra.mxu0 0.0
    %133 = vmatprep.subr.mxu0 0.0
    %134 = vmatpush1.msra.mxu0 0.0
    %135 = vmatprep.subr.mxu0 0.0
    %136 = vmatpush1.msra.mxu0 0.0
    %137 = vmatprep.subr.mxu0 0.0
    %138 = vmatpush1.msra.mxu0 0.0
    %139 = vmatprep.subr.mxu0 0.0
    %140 = vmatpush1.msra.mxu0 0.0
    %141 = vmatprep.subr.mxu0 0.0
    %142 = vmatpush1.msra.mxu0 0.0
    %143 = vmatprep.subr.mxu0 0.0
    %144 = vmatpush1.msra.mxu0 0.0
    %145 = vmatprep.subr.mxu0 0.0
    %146 = vmatpush1.msra.mxu0 0.0
    %147 = vmatprep.subr.mxu0 0.0
    %148 = vmatpush1.msra.mxu0 0.0
    %149 = vmatprep.subr.mxu0 0.0
    %150 = vmatpush1.msra.mxu0 0.0
    %151 = vmatprep.subr.mxu0 0.0
    %152 = vmatpush1.msra.mxu0 0.0
    %153 = vmatprep.subr.mxu0 0.0
    %154 = vmatpush1.msra.mxu0 0.0
    %155 = vmatprep.subr.mxu0 0.0
    %156 = vmatpush1.msra.mxu0 0.0
    %157 = vmatprep.subr.mxu0 0.0
    %158 = vmatpush1.msra.mxu0 0.0
    %159 = vmatprep.subr.mxu0 0.0
    %160 = vmatpush1.msra.mxu0 0.0
    %161 = vmatprep.subr.mxu0 0.0
    %162 = vmatpush1.msra.mxu0 0.0
    %163 = vmatprep.subr.mxu0 0.0
    %164 = vmatpush1.msra.mxu0 0.0
    %165 = vmatprep.subr.mxu0 0.0
    %166 = vmatpush1.msra.mxu0 0.0
    %167 = vmatprep.subr.mxu0 0.0
    %168 = vmatpush1.msra.mxu0 0.0
    %169 = vmatprep.subr.mxu0 0.0
    %170 = vmatpush1.msra.mxu0 0.0
    %171 = vmatprep.subr.mxu0 0.0
    %172 = vmatpush1.msra.mxu0 0.0
    %173 = vmatprep.subr.mxu0 0.0
    %174 = vmatpush1.msra.mxu0 0.0
    %175 = vmatprep.subr.mxu0 0.0
    %176 = vmatpush1.msra.mxu0 0.0
    %177 = vmatprep.subr.mxu0 0.0
    %178 = vmatpush1.msra.mxu0 0.0
    %179 = vmatprep.subr.mxu0 0.0
    %180 = vmatpush1.msra.mxu0 0.0
    %181 = vmatprep.mubr.f32.mxu0 0.0
    %182 = vmatmul.mubr.f32.gmra.mrb[0].mxu0 %v94
    %v183 = vpop.f32.mrb[0].mxu0
    %v184 = vadd.f32 0.0, %v183
    %v185 = vpop.f32.mrb[0].mxu0
    %186 = vmatprep.mubr.f32.mxu0 0.0
    %187 = vmatmul.mubr.f32.gmra.mrb[0].mxu0 %v97
    %v188 = vpop.f32.mrb[0].mxu0
    %v189 = vadd.f32 0.0, %v188
    %v190 = vpop.f32.mrb[0].mxu0
    %191 = vmatprep.mubr.f32.mxu0 0.0
    %192 = vmatmul.mubr.f32.gmra.mrb[0].mxu0 %v100
    %v193 = vpop.f32.mrb[0].mxu0
    %v194 = vadd.f32 0.0, %v193
    %v195 = vpop.f32.mrb[0].mxu0
    %196 = vmatprep.mubr.f32.mxu0 0.0
    %197 = vmatmul.mubr.f32.gmra.mrb[0].mxu0 %v103
    %v198 = vpop.f32.mrb[0].mxu0
    %v199 = vadd.f32 0.0, %v198
    %v200 = vpop.f32.mrb[0].mxu0
    %201 = vmatprep.mubr.f32.mxu0 0.0
    %202 = vmatmul.mubr.f32.gmra.mrb[0].mxu0 %v106
    %v203 = vpop.f32.mrb[0].mxu0
    %v204 = vadd.f32 0.0, %v203
    %v205 = vpop.f32.mrb[0].mxu0
    %206 = vmatprep.mubr.f32.mxu0 0.0
    %207 = vmatmul.mubr.f32.gmra.mrb[0].mxu0 %v109
    %v208 = vpop.f32.mrb[0].mxu0
    %v209 = vadd.f32 0.0, %v208
    %v210 = vpop.f32.mrb[0].mxu0
    %211 = vmatprep.mubr.f32.mxu0 0.0
    %212 = vmatmul.mubr.f32.gmra.mrb[0].mxu0 %v112
    %v213 = vpop.f32.mrb[0].mxu0
    %v214 = vadd.f32 0.0, %v213
    %v215 = vpop.f32.mrb[0].mxu0
    %216 = vmatprep.mubr.f32.mxu0 0.0
    %217 = vmatmul.mubr.f32.gmra.mrb[0].mxu0 %v115
    %v218 = vpop.f32.mrb[0].mxu0
    %v219 = vadd.f32 0.0, %v218
    %v220 = vpop.f32.mrb[0].mxu0
    %221 = vdwg.mxu0
    %222 = vst [vmem:[#allocation4] sm:$0xff] %v184
    %223 = vst [vmem:[#allocation4 + $0x8] sm:$0xff] %v189
    %224 = vst [vmem:[#allocation4 + $0x10] sm:$0xff] %v194
    %225 = vst [vmem:[#allocation4 + $0x18] sm:$0xff] %v199
    %226 = vst [vmem:[#allocation4 + $0x20] sm:$0xff] %v204
    %227 = vst [vmem:[#allocation4 + $0x28] sm:$0xff] %v209
    %228 = vst [vmem:[#allocation4 + $0x30] sm:$0xff] %v214
    %229 = vst [vmem:[#allocation4 + $0x38] sm:$0xff] %v219
    %v230 = vld [vmem:[#allocation10] sm:$0xff]
    %v231 = vld [vmem:[#allocation10 + $0x8] sm:$0xff]
    %v232 = vld [vmem:[#allocation10 + $0x10] sm:$0xff]
    %v233 = vld [vmem:[#allocation10 + $0x18] sm:$0xff]
    %v234 = vld [vmem:[%s3] sm:$0x1]
    %v235 = vlaneseq
    %v236 = vand.u32 %v235, 127
    %vm237 = vcmp.ge.s32.totalorder %v236, 64
    %vm238 = vcmp.lt.s32.totalorder %v236, 96
    %vm239 = vmand %vm237, %vm238
    %v240 = vsel %vm239, 2.0, 1.0
    %v241 = vld [vmem:[#allocation2] sm:$0xff]
    %v242 = vld [vmem:[#allocation3] sm:$0xff]
    %v243 = vld [vmem:[#allocation4] sm:$0xff]
    %vm244 = vcmask 261120
    %v246 = vsel %vm244, %v241, 0
    %248 = vmatprep.subr.mxu0 0.0
    %249 = vmatpush1.msra.mxu0 %v230
    %250 = vmatprep.subr.mxu0 0.0
    %251 = vmatpush1.msra.mxu0 %v231
    %252 = vmatprep.subr.mxu0 0.0
    %253 = vmatpush1.msra.mxu0 %v232
    %254 = vmatprep.subr.mxu0 0.0
    %255 = vmatpush1.msra.mxu0 %v233
    %256 = vmatprep.subr.mxu0 0.0
    %257 = vmatpush1.msra.mxu0 0.0
    %258 = vmatprep.subr.mxu0 0.0
    %259 = vmatpush1.msra.mxu0 0.0
    %260 = vmatprep.subr.mxu0 0.0
    %261 = vmatpush1.msra.mxu0 0.0
    %262 = vmatprep.subr.mxu0 0.0
    %263 = vmatpush1.msra.mxu0 0.0
    %264 = vmatprep.subr.mxu0 0.0
    %265 = vmatpush1.msra.mxu0 0.0
    %266 = vmatprep.subr.mxu0 0.0
    %267 = vmatpush1.msra.mxu0 0.0
    %268 = vmatprep.subr.mxu0 0.0
    %269 = vmatpush1.msra.mxu0 0.0
    %270 = vmatprep.subr.mxu0 0.0
    %271 = vmatpush1.msra.mxu0 0.0
    %272 = vmatprep.subr.mxu0 0.0
    %273 = vmatpush1.msra.mxu0 0.0
    %274 = vmatprep.subr.mxu0 0.0
    %275 = vmatpush1.msra.mxu0 0.0
    %276 = vmatprep.subr.mxu0 0.0
    %277 = vmatpush1.msra.mxu0 0.0
    %278 = vmatprep.subr.mxu0 0.0
    %279 = vmatpush1.msra.mxu0 0.0
    %280 = vmatprep.subr.mxu0 0.0
    %281 = vmatpush1.msra.mxu0 0.0
    %282 = vmatprep.subr.mxu0 0.0
    %283 = vmatpush1.msra.mxu0 0.0
    %284 = vmatprep.subr.mxu0 0.0
    %285 = vmatpush1.msra.mxu0 0.0
    %286 = vmatprep.subr.mxu0 0.0
    %287 = vmatpush1.msra.mxu0 0.0
    %288 = vmatprep.subr.mxu0 0.0
    %289 = vmatpush1.msra.mxu0 0.0
    %290 = vmatprep.subr.mxu0 0.0
    %291 = vmatpush1.msra.mxu0 0.0
    %292 = vmatprep.subr.mxu0 0.0
    %293 = vmatpush1.msra.mxu0 0.0
    %294 = vmatprep.subr.mxu0 0.0
    %295 = vmatpush1.msra.mxu0 0.0
    %296 = vmatprep.subr.mxu0 0.0
    %297 = vmatpush1.msra.mxu0 0.0
    %298 = vmatprep.subr.mxu0 0.0
    %299 = vmatpush1.msra.mxu0 0.0
    %300 = vmatprep.subr.mxu0 0.0
    %301 = vmatpush1.msra.mxu0 0.0
    %302 = vmatprep.subr.mxu0 0.0
    %303 = vmatpush1.msra.mxu0 0.0
    %304 = vmatprep.subr.mxu0 0.0
    %305 = vmatpush1.msra.mxu0 0.0
    %306 = vmatprep.subr.mxu0 0.0
    %307 = vmatpush1.msra.mxu0 0.0
    %308 = vmatprep.subr.mxu0 0.0
    %309 = vmatpush1.msra.mxu0 0.0
    %310 = vmatprep.subr.mxu0 0.0
    %311 = vmatpush1.msra.mxu0 0.0
    %312 = vmatprep.mubr.f32.mxu0 0.0
    %313 = vmatmul.mubr.f32.gmra.mrb[0].mxu0 %v246
    %v314 = vpop.f32.mrb[0].mxu0
    %v315 = vadd.f32 0.0, %v314
    %v316 = vpop.f32.mrb[0].mxu0
    %317 = vdwg.mxu0
    %v318 = vadd.f32 %v243, %v315
    %v319 = vmul.f32 %v318, %v240
    %v320 = vxor.u32 %v319, 2147483648
    %v321 = vmul.f32 %v320, 1.442695
    %v322 = vpow.pop %v321
    %v323 = vadd.f32 %v322, 1.0
    %v324 = vrcp.pop %v323
    %v325 = vmul.f32 1.0, %v324
    %v326 = vmul.f32 %v325, 2.0
    %v327 = vsub.f32 %v326, 1.0
    %v328 = vsel %vm239, %v327, %v325
    %330 = vrot.lane.b32.xlu0 %v242, 32
    %v331 = vpop.permute.xlu0 %330
    %v333 = vmul.f32 %v328, %v331
    %335 = vrot.lane.b32.xlu0 %v328, 64
    %v336 = vpop.permute.xlu0 %335
    %v338 = vmul.f32 %v328, %v336
    %340 = vrot.lane.b32.xlu0 %v338, 32
    %v341 = vpop.permute.xlu0 %340
    %v343 = vadd.f32 %v333, %v341
    %v344 = vtanh.pop %v343
    %346 = vrot.lane.b32.xlu0 %v344, 64
    %v347 = vpop.permute.xlu0 %346
    %v349 = vmul.f32 %v328, %v347
    %v350 = vmax.f32 %v349, 0.0
    %v351 = vmin.f32 %v350, 6.0
    %v353 = vlaneseq
    %v354 = vshrl.u32 %v353, 7
    %v355 = vsub.s32 0, %v354
    %v356 = vrot.slane %v234, %v355
    %357 = vrot.lane.b32.xlu0 %v356, 96
    %v358 = vpop.permute.xlu0 %357
    %v360 = vmul.f32 %v351, %v358
    %362 = vrot.lane.b32.xlu0 %v360, 32
    %v363 = vpop.permute.xlu0 %362
    %v365 = vsel %vm244, %v363, 0.0
    %366 = vadd.xlane.f32.xlu0 %v365
    %v367 = vpop.xlane.xlu0 %366
    %vm368 = vcmp.eq.s32.totalorder %v236, 0
    %v369 = vsel %vm368, %v367, 0.0
    %s370 = scalar_lea.vmem [#allocation4], 8
    %v371 = vld [vmem:[%s370] sm:$0xff]
    %373 = vrot.lane.b32.xlu0 %v349, 32
    %v374 = vpop.permute.xlu0 %373
    %v375 = vsel %vm244, %v374, 0
    %377 = vmatprep.subr.mxu0 0.0
    %378 = vmatpush1.msra.mxu0 %v230
    %379 = vmatprep.subr.mxu0 0.0
    %380 = vmatpush1.msra.mxu0 %v231
    %381 = vmatprep.subr.mxu0 0.0
    %382 = vmatpush1.msra.mxu0 %v232
    %383 = vmatprep.subr.mxu0 0.0
    %384 = vmatpush1.msra.mxu0 %v233
    %385 = vmatprep.subr.mxu0 0.0
    %386 = vmatpush1.msra.mxu0 0.0
    %387 = vmatprep.subr.mxu0 0.0
    %388 = vmatpush1.msra.mxu0 0.0
    %389 = vmatprep.subr.mxu0 0.0
    %390 = vmatpush1.msra.mxu0 0.0
    %391 = vmatprep.subr.mxu0 0.0
    %392 = vmatpush1.msra.mxu0 0.0
    %393 = vmatprep.subr.mxu0 0.0
    %394 = vmatpush1.msra.mxu0 0.0
    %395 = vmatprep.subr.mxu0 0.0
    %396 = vmatpush1.msra.mxu0 0.0
    %397 = vmatprep.subr.mxu0 0.0
    %398 = vmatpush1.msra.mxu0 0.0
    %399 = vmatprep.subr.mxu0 0.0
    %400 = vmatpush1.msra.mxu0 0.0
    %401 = vmatprep.subr.mxu0 0.0
    %402 = vmatpush1.msra.mxu0 0.0
    %403 = vmatprep.subr.mxu0 0.0
    %404 = vmatpush1.msra.mxu0 0.0
    %405 = vmatprep.subr.mxu0 0.0
    %406 = vmatpush1.msra.mxu0 0.0
    %407 = vmatprep.subr.mxu0 0.0
    %408 = vmatpush1.msra.mxu0 0.0
    %409 = vmatprep.subr.mxu0 0.0
    %410 = vmatpush1.msra.mxu0 0.0
    %411 = vmatprep.subr.mxu0 0.0
    %412 = vmatpush1.msra.mxu0 0.0
    %413 = vmatprep.subr.mxu0 0.0
    %414 = vmatpush1.msra.mxu0 0.0
    %415 = vmatprep.subr.mxu0 0.0
    %416 = vmatpush1.msra.mxu0 0.0
    %417 = vmatprep.subr.mxu0 0.0
    %418 = vmatpush1.msra.mxu0 0.0
    %419 = vmatprep.subr.mxu0 0.0
    %420 = vmatpush1.msra.mxu0 0.0
    %421 = vmatprep.subr.mxu0 0.0
    %422 = vmatpush1.msra.mxu0 0.0
    %423 = vmatprep.subr.mxu0 0.0
    %424 = vmatpush1.msra.mxu0 0.0
    %425 = vmatprep.subr.mxu0 0.0
    %426 = vmatpush1.msra.mxu0 0.0
    %427 = vmatprep.subr.mxu0 0.0
    %428 = vmatpush1.msra.mxu0 0.0
    %429 = vmatprep.subr.mxu0 0.0
    %430 = vmatpush1.msra.mxu0 0.0
    %431 = vmatprep.subr.mxu0 0.0
    %432 = vmatpush1.msra.mxu0 0.0
    %433 = vmatprep.subr.mxu0 0.0
    %434 = vmatpush1.msra.mxu0 0.0
    %435 = vmatprep.subr.mxu0 0.0
    %436 = vmatpush1.msra.mxu0 0.0
    %437 = vmatprep.subr.mxu0 0.0
    %438 = vmatpush1.msra.mxu0 0.0
    %439 = vmatprep.subr.mxu0 0.0
    %440 = vmatpush1.msra.mxu0 0.0
    %441 = vmatprep.mubr.f32.mxu0 0.0
    %442 = vmatmul.mubr.f32.gmra.mrb[0].mxu0 %v375
    %v443 = vpop.f32.mrb[0].mxu0
    %v444 = vadd.f32 0.0, %v443
    %v445 = vpop.f32.mrb[0].mxu0
    %446 = vdwg.mxu0
    %v447 = vadd.f32 %v371, %v444
    %v448 = vmul.f32 %v447, %v240
    %v449 = vxor.u32 %v448, 2147483648
    %v450 = vmul.f32 %v449, 1.442695
    %v451 = vpow.pop %v450
    %v452 = vadd.f32 %v451, 1.0
    %v453 = vrcp.pop %v452
    %v454 = vmul.f32 1.0, %v453
    %v455 = vmul.f32 %v454, 2.0
    %v456 = vsub.f32 %v455, 1.0
    %v457 = vsel %vm239, %v456, %v454
    %v458 = vmul.f32 %v457, %v343
    %460 = vrot.lane.b32.xlu0 %v457, 64
    %v461 = vpop.permute.xlu0 %460
    %v463 = vmul.f32 %v457, %v461
    %465 = vrot.lane.b32.xlu0 %v463, 32
    %v466 = vpop.permute.xlu0 %465
    %v468 = vadd.f32 %v458, %v466
    %v469 = vtanh.pop %v468
    %471 = vrot.lane.b32.xlu0 %v469, 64
    %v472 = vpop.permute.xlu0 %471
    %v474 = vmul.f32 %v457, %v472
    %v475 = vmax.f32 %v474, 0.0
    %v476 = vmin.f32 %v475, 6.0
    %v477 = vmul.f32 %v476, %v358
    %479 = vrot.lane.b32.xlu0 %v477, 32
    %v480 = vpop.permute.xlu0 %479
    %v482 = vsel %vm244, %v480, 0.0
    %483 = vadd.xlane.f32.xlu0 %v482
    %v484 = vpop.xlane.xlu0 %483
    %vm485 = vcmp.eq.s32.totalorder %v236, 1
    %v486 = vsel %vm485, %v484, %v369
    %s487 = scalar_lea.vmem [#allocation4], 16
    %v488 = vld [vmem:[%s487] sm:$0xff]
    %490 = vrot.lane.b32.xlu0 %v474, 32
    %v491 = vpop.permute.xlu0 %490
    %v492 = vsel %vm244, %v491, 0
    %494 = vmatprep.subr.mxu0 0.0
    %495 = vmatpush1.msra.mxu0 %v230
    %496 = vmatprep.subr.mxu0 0.0
    %497 = vmatpush1.msra.mxu0 %v231
    %498 = vmatprep.subr.mxu0 0.0
    %499 = vmatpush1.msra.mxu0 %v232
    %500 = vmatprep.subr.mxu0 0.0
    %501 = vmatpush1.msra.mxu0 %v233
    %502 = vmatprep.subr.mxu0 0.0
    %503 = vmatpush1.msra.mxu0 0.0
    %504 = vmatprep.subr.mxu0 0.0
    %505 = vmatpush1.msra.mxu0 0.0
    %506 = vmatprep.subr.mxu0 0.0
    %507 = vmatpush1.msra.mxu0 0.0
    %508 = vmatprep.subr.mxu0 0.0
    %509 = vmatpush1.msra.mxu0 0.0
    %510 = vmatprep.subr.mxu0 0.0
    %511 = vmatpush1.msra.mxu0 0.0
    %512 = vmatprep.subr.mxu0 0.0
    %513 = vmatpush1.msra.mxu0 0.0
    %514 = vmatprep.subr.mxu0 0.0
    %515 = vmatpush1.msra.mxu0 0.0
    %516 = vmatprep.subr.mxu0 0.0
    %517 = vmatpush1.msra.mxu0 0.0
    %518 = vmatprep.subr.mxu0 0.0
    %519 = vmatpush1.msra.mxu0 0.0
    %520 = vmatprep.subr.mxu0 0.0
    %521 = vmatpush1.msra.mxu0 0.0
    %522 = vmatprep.subr.mxu0 0.0
    %523 = vmatpush1.msra.mxu0 0.0
    %524 = vmatprep.subr.mxu0 0.0
    %525 = vmatpush1.msra.mxu0 0.0
    %526 = vmatprep.subr.mxu0 0.0
    %527 = vmatpush1.msra.mxu0 0.0
    %528 = vmatprep.subr.mxu0 0.0
    %529 = vmatpush1.msra.mxu0 0.0
    %530 = vmatprep.subr.mxu0 0.0
    %531 = vmatpush1.msra.mxu0 0.0
    %532 = vmatprep.subr.mxu0 0.0
    %533 = vmatpush1.msra.mxu0 0.0
    %534 = vmatprep.subr.mxu0 0.0
    %535 = vmatpush1.msra.mxu0 0.0
    %536 = vmatprep.subr.mxu0 0.0
    %537 = vmatpush1.msra.mxu0 0.0
    %538 = vmatprep.subr.mxu0 0.0
    %539 = vmatpush1.msra.mxu0 0.0
    %540 = vmatprep.subr.mxu0 0.0
    %541 = vmatpush1.msra.mxu0 0.0
    %542 = vmatprep.subr.mxu0 0.0
    %543 = vmatpush1.msra.mxu0 0.0
    %544 = vmatprep.subr.mxu0 0.0
    %545 = vmatpush1.msra.mxu0 0.0
    %546 = vmatprep.subr.mxu0 0.0
    %547 = vmatpush1.msra.mxu0 0.0
    %548 = vmatprep.subr.mxu0 0.0
    %549 = vmatpush1.msra.mxu0 0.0
    %550 = vmatprep.subr.mxu0 0.0
    %551 = vmatpush1.msra.mxu0 0.0
    %552 = vmatprep.subr.mxu0 0.0
    %553 = vmatpush1.msra.mxu0 0.0
    %554 = vmatprep.subr.mxu0 0.0
    %555 = vmatpush1.msra.mxu0 0.0
    %556 = vmatprep.subr.mxu0 0.0
    %557 = vmatpush1.msra.mxu0 0.0
    %558 = vmatprep.mubr.f32.mxu0 0.0
    %559 = vmatmul.mubr.f32.gmra.mrb[0].mxu0 %v492
    %v560 = vpop.f32.mrb[0].mxu0
    %v561 = vadd.f32 0.0, %v560
    %v562 = vpop.f32.mrb[0].mxu0
    %563 = vdwg.mxu0
    %v564 = vadd.f32 %v488, %v561
    %v565 = vmul.f32 %v564, %v240
    %v566 = vxor.u32 %v565, 2147483648
    %v567 = vmul.f32 %v566, 1.442695
    %v568 = vpow.pop %v567
    %v569 = vadd.f32 %v568, 1.0
    %v570 = vrcp.pop %v569
    %v571 = vmul.f32 1.0, %v570
    %v572 = vmul.f32 %v571, 2.0
    %v573 = vsub.f32 %v572, 1.0
    %v574 = vsel %vm239, %v573, %v571
    %v575 = vmul.f32 %v574, %v468
    %577 = vrot.lane.b32.xlu0 %v574, 64
    %v578 = vpop.permute.xlu0 %577
    %v580 = vmul.f32 %v574, %v578
    %582 = vrot.lane.b32.xlu0 %v580, 32
    %v583 = vpop.permute.xlu0 %582
    %v585 = vadd.f32 %v575, %v583
    %v586 = vtanh.pop %v585
    %588 = vrot.lane.b32.xlu0 %v586, 64
    %v589 = vpop.permute.xlu0 %588
    %v591 = vmul.f32 %v574, %v589
    %v592 = vmax.f32 %v591, 0.0
    %v593 = vmin.f32 %v592, 6.0
    %v594 = vmul.f32 %v593, %v358
    %596 = vrot.lane.b32.xlu0 %v594, 32
    %v597 = vpop.permute.xlu0 %596
    %v599 = vsel %vm244, %v597, 0.0
    %600 = vadd.xlane.f32.xlu0 %v599
    %v601 = vpop.xlane.xlu0 %600
    %vm602 = vcmp.eq.s32.totalorder %v236, 2
    %v603 = vsel %vm602, %v601, %v486
    %s604 = scalar_lea.vmem [#allocation4], 24
    %v605 = vld [vmem:[%s604] sm:$0xff]
    %607 = vrot.lane.b32.xlu0 %v591, 32
    %v608 = vpop.permute.xlu0 %607
    %v609 = vsel %vm244, %v608, 0
    %611 = vmatprep.subr.mxu0 0.0
    %612 = vmatpush1.msra.mxu0 %v230
    %613 = vmatprep.subr.mxu0 0.0
    %614 = vmatpush1.msra.mxu0 %v231
    %615 = vmatprep.subr.mxu0 0.0
    %616 = vmatpush1.msra.mxu0 %v232
    %617 = vmatprep.subr.mxu0 0.0
    %618 = vmatpush1.msra.mxu0 %v233
    %619 = vmatprep.subr.mxu0 0.0
    %620 = vmatpush1.msra.mxu0 0.0
    %621 = vmatprep.subr.mxu0 0.0
    %622 = vmatpush1.msra.mxu0 0.0
    %623 = vmatprep.subr.mxu0 0.0
    %624 = vmatpush1.msra.mxu0 0.0
    %625 = vmatprep.subr.mxu0 0.0
    %626 = vmatpush1.msra.mxu0 0.0
    %627 = vmatprep.subr.mxu0 0.0
    %628 = vmatpush1.msra.mxu0 0.0
    %629 = vmatprep.subr.mxu0 0.0
    %630 = vmatpush1.msra.mxu0 0.0
    %631 = vmatprep.subr.mxu0 0.0
    %632 = vmatpush1.msra.mxu0 0.0
    %633 = vmatprep.subr.mxu0 0.0
    %634 = vmatpush1.msra.mxu0 0.0
    %635 = vmatprep.subr.mxu0 0.0
    %636 = vmatpush1.msra.mxu0 0.0
    %637 = vmatprep.subr.mxu0 0.0
    %638 = vmatpush1.msra.mxu0 0.0
    %639 = vmatprep.subr.mxu0 0.0
    %640 = vmatpush1.msra.mxu0 0.0
    %641 = vmatprep.subr.mxu0 0.0
    %642 = vmatpush1.msra.mxu0 0.0
    %643 = vmatprep.subr.mxu0 0.0
    %644 = vmatpush1.msra.mxu0 0.0
    %645 = vmatprep.subr.mxu0 0.0
    %646 = vmatpush1.msra.mxu0 0.0
    %647 = vmatprep.subr.mxu0 0.0
    %648 = vmatpush1.msra.mxu0 0.0
    %649 = vmatprep.subr.mxu0 0.0
    %650 = vmatpush1.msra.mxu0 0.0
    %651 = vmatprep.subr.mxu0 0.0
    %652 = vmatpush1.msra.mxu0 0.0
    %653 = vmatprep.subr.mxu0 0.0
    %654 = vmatpush1.msra.mxu0 0.0
    %655 = vmatprep.subr.mxu0 0.0
    %656 = vmatpush1.msra.mxu0 0.0
    %657 = vmatprep.subr.mxu0 0.0
    %658 = vmatpush1.msra.mxu0 0.0
    %659 = vmatprep.subr.mxu0 0.0
    %660 = vmatpush1.msra.mxu0 0.0
    %661 = vmatprep.subr.mxu0 0.0
    %662 = vmatpush1.msra.mxu0 0.0
    %663 = vmatprep.subr.mxu0 0.0
    %664 = vmatpush1.msra.mxu0 0.0
    %665 = vmatprep.subr.mxu0 0.0
    %666 = vmatpush1.msra.mxu0 0.0
    %667 = vmatprep.subr.mxu0 0.0
    %668 = vmatpush1.msra.mxu0 0.0
    %669 = vmatprep.subr.mxu0 0.0
    %670 = vmatpush1.msra.mxu0 0.0
    %671 = vmatprep.subr.mxu0 0.0
    %672 = vmatpush1.msra.mxu0 0.0
    %673 = vmatprep.subr.mxu0 0.0
    %674 = vmatpush1.msra.mxu0 0.0
    %675 = vmatprep.mubr.f32.mxu0 0.0
    %676 = vmatmul.mubr.f32.gmra.mrb[0].mxu0 %v609
    %v677 = vpop.f32.mrb[0].mxu0
    %v678 = vadd.f32 0.0, %v677
    %v679 = vpop.f32.mrb[0].mxu0
    %680 = vdwg.mxu0
    %v681 = vadd.f32 %v605, %v678
    %v682 = vmul.f32 %v681, %v240
    %v683 = vxor.u32 %v682, 2147483648
    %v684 = vmul.f32 %v683, 1.442695
    %v685 = vpow.pop %v684
    %v686 = vadd.f32 %v685, 1.0
    %v687 = vrcp.pop %v686
    %v688 = vmul.f32 1.0, %v687
    %v689 = vmul.f32 %v688, 2.0
    %v690 = vsub.f32 %v689, 1.0
    %v691 = vsel %vm239, %v690, %v688
    %v692 = vmul.f32 %v691, %v585
    %694 = vrot.lane.b32.xlu0 %v691, 64
    %v695 = vpop.permute.xlu0 %694
    %v697 = vmul.f32 %v691, %v695
    %699 = vrot.lane.b32.xlu0 %v697, 32
    %v700 = vpop.permute.xlu0 %699
    %v702 = vadd.f32 %v692, %v700
    %v703 = vtanh.pop %v702
    %705 = vrot.lane.b32.xlu0 %v703, 64
    %v706 = vpop.permute.xlu0 %705
    %v708 = vmul.f32 %v691, %v706
    %v709 = vmax.f32 %v708, 0.0
    %v710 = vmin.f32 %v709, 6.0
    %v711 = vmul.f32 %v710, %v358
    %713 = vrot.lane.b32.xlu0 %v711, 32
    %v714 = vpop.permute.xlu0 %713
    %v716 = vsel %vm244, %v714, 0.0
    %717 = vadd.xlane.f32.xlu0 %v716
    %v718 = vpop.xlane.xlu0 %717
    %vm719 = vcmp.eq.s32.totalorder %v236, 3
    %v720 = vsel %vm719, %v718, %v603
    %s721 = scalar_lea.vmem [#allocation4], 32
    %v722 = vld [vmem:[%s721] sm:$0xff]
    %724 = vrot.lane.b32.xlu0 %v708, 32
    %v725 = vpop.permute.xlu0 %724
    %v726 = vsel %vm244, %v725, 0
    %728 = vmatprep.subr.mxu0 0.0
    %729 = vmatpush1.msra.mxu0 %v230
    %730 = vmatprep.subr.mxu0 0.0
    %731 = vmatpush1.msra.mxu0 %v231
    %732 = vmatprep.subr.mxu0 0.0
    %733 = vmatpush1.msra.mxu0 %v232
    %734 = vmatprep.subr.mxu0 0.0
    %735 = vmatpush1.msra.mxu0 %v233
    %736 = vmatprep.subr.mxu0 0.0
    %737 = vmatpush1.msra.mxu0 0.0
    %738 = vmatprep.subr.mxu0 0.0
    %739 = vmatpush1.msra.mxu0 0.0
    %740 = vmatprep.subr.mxu0 0.0
    %741 = vmatpush1.msra.mxu0 0.0
    %742 = vmatprep.subr.mxu0 0.0
    %743 = vmatpush1.msra.mxu0 0.0
    %744 = vmatprep.subr.mxu0 0.0
    %745 = vmatpush1.msra.mxu0 0.0
    %746 = vmatprep.subr.mxu0 0.0
    %747 = vmatpush1.msra.mxu0 0.0
    %748 = vmatprep.subr.mxu0 0.0
    %749 = vmatpush1.msra.mxu0 0.0
    %750 = vmatprep.subr.mxu0 0.0
    %751 = vmatpush1.msra.mxu0 0.0
    %752 = vmatprep.subr.mxu0 0.0
    %753 = vmatpush1.msra.mxu0 0.0
    %754 = vmatprep.subr.mxu0 0.0
    %755 = vmatpush1.msra.mxu0 0.0
    %756 = vmatprep.subr.mxu0 0.0
    %757 = vmatpush1.msra.mxu0 0.0
    %758 = vmatprep.subr.mxu0 0.0
    %759 = vmatpush1.msra.mxu0 0.0
    %760 = vmatprep.subr.mxu0 0.0
    %761 = vmatpush1.msra.mxu0 0.0
    %762 = vmatprep.subr.mxu0 0.0
    %763 = vmatpush1.msra.mxu0 0.0
    %764 = vmatprep.subr.mxu0 0.0
    %765 = vmatpush1.msra.mxu0 0.0
    %766 = vmatprep.subr.mxu0 0.0
    %767 = vmatpush1.msra.mxu0 0.0
    %768 = vmatprep.subr.mxu0 0.0
    %769 = vmatpush1.msra.mxu0 0.0
    %770 = vmatprep.subr.mxu0 0.0
    %771 = vmatpush1.msra.mxu0 0.0
    %772 = vmatprep.subr.mxu0 0.0
    %773 = vmatpush1.msra.mxu0 0.0
    %774 = vmatprep.subr.mxu0 0.0
    %775 = vmatpush1.msra.mxu0 0.0
    %776 = vmatprep.subr.mxu0 0.0
    %777 = vmatpush1.msra.mxu0 0.0
    %778 = vmatprep.subr.mxu0 0.0
    %779 = vmatpush1.msra.mxu0 0.0
    %780 = vmatprep.subr.mxu0 0.0
    %781 = vmatpush1.msra.mxu0 0.0
    %782 = vmatprep.subr.mxu0 0.0
    %783 = vmatpush1.msra.mxu0 0.0
    %784 = vmatprep.subr.mxu0 0.0
    %785 = vmatpush1.msra.mxu0 0.0
    %786 = vmatprep.subr.mxu0 0.0
    %787 = vmatpush1.msra.mxu0 0.0
    %788 = vmatprep.subr.mxu0 0.0
    %789 = vmatpush1.msra.mxu0 0.0
    %790 = vmatprep.subr.mxu0 0.0
    %791 = vmatpush1.msra.mxu0 0.0
    %792 = vmatprep.mubr.f32.mxu0 0.0
    %793 = vmatmul.mubr.f32.gmra.mrb[0].mxu0 %v726
    %v794 = vpop.f32.mrb[0].mxu0
    %v795 = vadd.f32 0.0, %v794
    %v796 = vpop.f32.mrb[0].mxu0
    %797 = vdwg.mxu0
    %v798 = vadd.f32 %v722, %v795
    %v799 = vmul.f32 %v798, %v240
    %v800 = vxor.u32 %v799, 2147483648
    %v801 = vmul.f32 %v800, 1.442695
    %v802 = vpow.pop %v801
    %v803 = vadd.f32 %v802, 1.0
    %v804 = vrcp.pop %v803
    %v805 = vmul.f32 1.0, %v804
    %v806 = vmul.f32 %v805, 2.0
    %v807 = vsub.f32 %v806, 1.0
    %v808 = vsel %vm239, %v807, %v805
    %v809 = vmul.f32 %v808, %v702
    %811 = vrot.lane.b32.xlu0 %v808, 64
    %v812 = vpop.permute.xlu0 %811
    %v814 = vmul.f32 %v808, %v812
    %816 = vrot.lane.b32.xlu0 %v814, 32
    %v817 = vpop.permute.xlu0 %816
    %v819 = vadd.f32 %v809, %v817
    %v820 = vtanh.pop %v819
    %822 = vrot.lane.b32.xlu0 %v820, 64
    %v823 = vpop.permute.xlu0 %822
    %v825 = vmul.f32 %v808, %v823
    %v826 = vmax.f32 %v825, 0.0
    %v827 = vmin.f32 %v826, 6.0
    %v828 = vmul.f32 %v827, %v358
    %830 = vrot.lane.b32.xlu0 %v828, 32
    %v831 = vpop.permute.xlu0 %830
    %v833 = vsel %vm244, %v831, 0.0
    %834 = vadd.xlane.f32.xlu0 %v833
    %v835 = vpop.xlane.xlu0 %834
    %vm836 = vcmp.eq.s32.totalorder %v236, 4
    %v837 = vsel %vm836, %v835, %v720
    %s838 = scalar_lea.vmem [#allocation4], 40
    %v839 = vld [vmem:[%s838] sm:$0xff]
    %841 = vrot.lane.b32.xlu0 %v825, 32
    %v842 = vpop.permute.xlu0 %841
    %v843 = vsel %vm244, %v842, 0
    %845 = vmatprep.subr.mxu0 0.0
    %846 = vmatpush1.msra.mxu0 %v230
    %847 = vmatprep.subr.mxu0 0.0
    %848 = vmatpush1.msra.mxu0 %v231
    %849 = vmatprep.subr.mxu0 0.0
    %850 = vmatpush1.msra.mxu0 %v232
    %851 = vmatprep.subr.mxu0 0.0
    %852 = vmatpush1.msra.mxu0 %v233
    %853 = vmatprep.subr.mxu0 0.0
    %854 = vmatpush1.msra.mxu0 0.0
    %855 = vmatprep.subr.mxu0 0.0
    %856 = vmatpush1.msra.mxu0 0.0
    %857 = vmatprep.subr.mxu0 0.0
    %858 = vmatpush1.msra.mxu0 0.0
    %859 = vmatprep.subr.mxu0 0.0
    %860 = vmatpush1.msra.mxu0 0.0
    %861 = vmatprep.subr.mxu0 0.0
    %862 = vmatpush1.msra.mxu0 0.0
    %863 = vmatprep.subr.mxu0 0.0
    %864 = vmatpush1.msra.mxu0 0.0
    %865 = vmatprep.subr.mxu0 0.0
    %866 = vmatpush1.msra.mxu0 0.0
    %867 = vmatprep.subr.mxu0 0.0
    %868 = vmatpush1.msra.mxu0 0.0
    %869 = vmatprep.subr.mxu0 0.0
    %870 = vmatpush1.msra.mxu0 0.0
    %871 = vmatprep.subr.mxu0 0.0
    %872 = vmatpush1.msra.mxu0 0.0
    %873 = vmatprep.subr.mxu0 0.0
    %874 = vmatpush1.msra.mxu0 0.0
    %875 = vmatprep.subr.mxu0 0.0
    %876 = vmatpush1.msra.mxu0 0.0
    %877 = vmatprep.subr.mxu0 0.0
    %878 = vmatpush1.msra.mxu0 0.0
    %879 = vmatprep.subr.mxu0 0.0
    %880 = vmatpush1.msra.mxu0 0.0
    %881 = vmatprep.subr.mxu0 0.0
    %882 = vmatpush1.msra.mxu0 0.0
    %883 = vmatprep.subr.mxu0 0.0
    %884 = vmatpush1.msra.mxu0 0.0
    %885 = vmatprep.subr.mxu0 0.0
    %886 = vmatpush1.msra.mxu0 0.0
    %887 = vmatprep.subr.mxu0 0.0
    %888 = vmatpush1.msra.mxu0 0.0
    %889 = vmatprep.subr.mxu0 0.0
    %890 = vmatpush1.msra.mxu0 0.0
    %891 = vmatprep.subr.mxu0 0.0
    %892 = vmatpush1.msra.mxu0 0.0
    %893 = vmatprep.subr.mxu0 0.0
    %894 = vmatpush1.msra.mxu0 0.0
    %895 = vmatprep.subr.mxu0 0.0
    %896 = vmatpush1.msra.mxu0 0.0
    %897 = vmatprep.subr.mxu0 0.0
    %898 = vmatpush1.msra.mxu0 0.0
    %899 = vmatprep.subr.mxu0 0.0
    %900 = vmatpush1.msra.mxu0 0.0
    %901 = vmatprep.subr.mxu0 0.0
    %902 = vmatpush1.msra.mxu0 0.0
    %903 = vmatprep.subr.mxu0 0.0
    %904 = vmatpush1.msra.mxu0 0.0
    %905 = vmatprep.subr.mxu0 0.0
    %906 = vmatpush1.msra.mxu0 0.0
    %907 = vmatprep.subr.mxu0 0.0
    %908 = vmatpush1.msra.mxu0 0.0
    %909 = vmatprep.mubr.f32.mxu0 0.0
    %910 = vmatmul.mubr.f32.gmra.mrb[0].mxu0 %v843
    %v911 = vpop.f32.mrb[0].mxu0
    %v912 = vadd.f32 0.0, %v911
    %v913 = vpop.f32.mrb[0].mxu0
    %914 = vdwg.mxu0
    %v915 = vadd.f32 %v839, %v912
    %v916 = vmul.f32 %v915, %v240
    %v917 = vxor.u32 %v916, 2147483648
    %v918 = vmul.f32 %v917, 1.442695
    %v919 = vpow.pop %v918
    %v920 = vadd.f32 %v919, 1.0
    %v921 = vrcp.pop %v920
    %v922 = vmul.f32 1.0, %v921
    %v923 = vmul.f32 %v922, 2.0
    %v924 = vsub.f32 %v923, 1.0
    %v925 = vsel %vm239, %v924, %v922
    %v926 = vmul.f32 %v925, %v819
    %928 = vrot.lane.b32.xlu0 %v925, 64
    %v929 = vpop.permute.xlu0 %928
    %v931 = vmul.f32 %v925, %v929
    %933 = vrot.lane.b32.xlu0 %v931, 32
    %v934 = vpop.permute.xlu0 %933
    %v936 = vadd.f32 %v926, %v934
    %v937 = vtanh.pop %v936
    %939 = vrot.lane.b32.xlu0 %v937, 64
    %v940 = vpop.permute.xlu0 %939
    %v942 = vmul.f32 %v925, %v940
    %v943 = vmax.f32 %v942, 0.0
    %v944 = vmin.f32 %v943, 6.0
    %v945 = vmul.f32 %v944, %v358
    %947 = vrot.lane.b32.xlu0 %v945, 32
    %v948 = vpop.permute.xlu0 %947
    %v950 = vsel %vm244, %v948, 0.0
    %951 = vadd.xlane.f32.xlu0 %v950
    %v952 = vpop.xlane.xlu0 %951
    %vm953 = vcmp.eq.s32.totalorder %v236, 5
    %v954 = vsel %vm953, %v952, %v837
    %s955 = scalar_lea.vmem [#allocation4], 48
    %v956 = vld [vmem:[%s955] sm:$0xff]
    %958 = vrot.lane.b32.xlu0 %v942, 32
    %v959 = vpop.permute.xlu0 %958
    %v960 = vsel %vm244, %v959, 0
    %962 = vmatprep.subr.mxu0 0.0
    %963 = vmatpush1.msra.mxu0 %v230
    %964 = vmatprep.subr.mxu0 0.0
    %965 = vmatpush1.msra.mxu0 %v231
    %966 = vmatprep.subr.mxu0 0.0
    %967 = vmatpush1.msra.mxu0 %v232
    %968 = vmatprep.subr.mxu0 0.0
    %969 = vmatpush1.msra.mxu0 %v233
    %970 = vmatprep.subr.mxu0 0.0
    %971 = vmatpush1.msra.mxu0 0.0
    %972 = vmatprep.subr.mxu0 0.0
    %973 = vmatpush1.msra.mxu0 0.0
    %974 = vmatprep.subr.mxu0 0.0
    %975 = vmatpush1.msra.mxu0 0.0
    %976 = vmatprep.subr.mxu0 0.0
    %977 = vmatpush1.msra.mxu0 0.0
    %978 = vmatprep.subr.mxu0 0.0
    %979 = vmatpush1.msra.mxu0 0.0
    %980 = vmatprep.subr.mxu0 0.0
    %981 = vmatpush1.msra.mxu0 0.0
    %982 = vmatprep.subr.mxu0 0.0
    %983 = vmatpush1.msra.mxu0 0.0
    %984 = vmatprep.subr.mxu0 0.0
    %985 = vmatpush1.msra.mxu0 0.0
    %986 = vmatprep.subr.mxu0 0.0
    %987 = vmatpush1.msra.mxu0 0.0
    %988 = vmatprep.subr.mxu0 0.0
    %989 = vmatpush1.msra.mxu0 0.0
    %990 = vmatprep.subr.mxu0 0.0
    %991 = vmatpush1.msra.mxu0 0.0
    %992 = vmatprep.subr.mxu0 0.0
    %993 = vmatpush1.msra.mxu0 0.0
    %994 = vmatprep.subr.mxu0 0.0
    %995 = vmatpush1.msra.mxu0 0.0
    %996 = vmatprep.subr.mxu0 0.0
    %997 = vmatpush1.msra.mxu0 0.0
    %998 = vmatprep.subr.mxu0 0.0
    %999 = vmatpush1.msra.mxu0 0.0
    %1000 = vmatprep.subr.mxu0 0.0
    %1001 = vmatpush1.msra.mxu0 0.0
    %1002 = vmatprep.subr.mxu0 0.0
    %1003 = vmatpush1.msra.mxu0 0.0
    %1004 = vmatprep.subr.mxu0 0.0
    %1005 = vmatpush1.msra.mxu0 0.0
    %1006 = vmatprep.subr.mxu0 0.0
    %1007 = vmatpush1.msra.mxu0 0.0
    %1008 = vmatprep.subr.mxu0 0.0
    %1009 = vmatpush1.msra.mxu0 0.0
    %1010 = vmatprep.subr.mxu0 0.0
    %1011 = vmatpush1.msra.mxu0 0.0
    %1012 = vmatprep.subr.mxu0 0.0
    %1013 = vmatpush1.msra.mxu0 0.0
    %1014 = vmatprep.subr.mxu0 0.0
    %1015 = vmatpush1.msra.mxu0 0.0
    %1016 = vmatprep.subr.mxu0 0.0
    %1017 = vmatpush1.msra.mxu0 0.0
    %1018 = vmatprep.subr.mxu0 0.0
    %1019 = vmatpush1.msra.mxu0 0.0
    %1020 = vmatprep.subr.mxu0 0.0
    %1021 = vmatpush1.msra.mxu0 0.0
    %1022 = vmatprep.subr.mxu0 0.0
    %1023 = vmatpush1.msra.mxu0 0.0
    %1024 = vmatprep.subr.mxu0 0.0
    %1025 = vmatpush1.msra.mxu0 0.0
    %1026 = vmatprep.mubr.f32.mxu0 0.0
    %1027 = vmatmul.mubr.f32.gmra.mrb[0].mxu0 %v960
    %v1028 = vpop.f32.mrb[0].mxu0
    %v1029 = vadd.f32 0.0, %v1028
    %v1030 = vpop.f32.mrb[0].mxu0
    %1031 = vdwg.mxu0
    %v1032 = vadd.f32 %v956, %v1029
    %v1033 = vmul.f32 %v1032, %v240
    %v1034 = vxor.u32 %v1033, 2147483648
    %v1035 = vmul.f32 %v1034, 1.442695
    %v1036 = vpow.pop %v1035
    %v1037 = vadd.f32 %v1036, 1.0
    %v1038 = vrcp.pop %v1037
    %v1039 = vmul.f32 1.0, %v1038
    %v1040 = vmul.f32 %v1039, 2.0
    %v1041 = vsub.f32 %v1040, 1.0
    %v1042 = vsel %vm239, %v1041, %v1039
    %v1043 = vmul.f32 %v1042, %v936
    %1045 = vrot.lane.b32.xlu0 %v1042, 64
    %v1046 = vpop.permute.xlu0 %1045
    %v1048 = vmul.f32 %v1042, %v1046
    %1050 = vrot.lane.b32.xlu0 %v1048, 32
    %v1051 = vpop.permute.xlu0 %1050
    %v1053 = vadd.f32 %v1043, %v1051
    %v1054 = vtanh.pop %v1053
    %1056 = vrot.lane.b32.xlu0 %v1054, 64
    %v1057 = vpop.permute.xlu0 %1056
    %v1059 = vmul.f32 %v1042, %v1057
    %v1060 = vmax.f32 %v1059, 0.0
    %v1061 = vmin.f32 %v1060, 6.0
    %v1062 = vmul.f32 %v1061, %v358
    %1064 = vrot.lane.b32.xlu0 %v1062, 32
    %v1065 = vpop.permute.xlu0 %1064
    %v1067 = vsel %vm244, %v1065, 0.0
    %1068 = vadd.xlane.f32.xlu0 %v1067
    %v1069 = vpop.xlane.xlu0 %1068
    %vm1070 = vcmp.eq.s32.totalorder %v236, 6
    %v1071 = vsel %vm1070, %v1069, %v954
    %s1072 = scalar_lea.vmem [#allocation4], 56
    %v1073 = vld [vmem:[%s1072] sm:$0xff]
    %1075 = vrot.lane.b32.xlu0 %v1059, 32
    %v1076 = vpop.permute.xlu0 %1075
    %v1077 = vsel %vm244, %v1076, 0
    %1079 = vmatprep.subr.mxu0 0.0
    %1080 = vmatpush1.msra.mxu0 %v230
    %1081 = vmatprep.subr.mxu0 0.0
    %1082 = vmatpush1.msra.mxu0 %v231
    %1083 = vmatprep.subr.mxu0 0.0
    %1084 = vmatpush1.msra.mxu0 %v232
    %1085 = vmatprep.subr.mxu0 0.0
    %1086 = vmatpush1.msra.mxu0 %v233
    %1087 = vmatprep.subr.mxu0 0.0
    %1088 = vmatpush1.msra.mxu0 0.0
    %1089 = vmatprep.subr.mxu0 0.0
    %1090 = vmatpush1.msra.mxu0 0.0
    %1091 = vmatprep.subr.mxu0 0.0
    %1092 = vmatpush1.msra.mxu0 0.0
    %1093 = vmatprep.subr.mxu0 0.0
    %1094 = vmatpush1.msra.mxu0 0.0
    %1095 = vmatprep.subr.mxu0 0.0
    %1096 = vmatpush1.msra.mxu0 0.0
    %1097 = vmatprep.subr.mxu0 0.0
    %1098 = vmatpush1.msra.mxu0 0.0
    %1099 = vmatprep.subr.mxu0 0.0
    %1100 = vmatpush1.msra.mxu0 0.0
    %1101 = vmatprep.subr.mxu0 0.0
    %1102 = vmatpush1.msra.mxu0 0.0
    %1103 = vmatprep.subr.mxu0 0.0
    %1104 = vmatpush1.msra.mxu0 0.0
    %1105 = vmatprep.subr.mxu0 0.0
    %1106 = vmatpush1.msra.mxu0 0.0
    %1107 = vmatprep.subr.mxu0 0.0
    %1108 = vmatpush1.msra.mxu0 0.0
    %1109 = vmatprep.subr.mxu0 0.0
    %1110 = vmatpush1.msra.mxu0 0.0
    %1111 = vmatprep.subr.mxu0 0.0
    %1112 = vmatpush1.msra.mxu0 0.0
    %1113 = vmatprep.subr.mxu0 0.0
    %1114 = vmatpush1.msra.mxu0 0.0
    %1115 = vmatprep.subr.mxu0 0.0
    %1116 = vmatpush1.msra.mxu0 0.0
    %1117 = vmatprep.subr.mxu0 0.0
    %1118 = vmatpush1.msra.mxu0 0.0
    %1119 = vmatprep.subr.mxu0 0.0
    %1120 = vmatpush1.msra.mxu0 0.0
    %1121 = vmatprep.subr.mxu0 0.0
    %1122 = vmatpush1.msra.mxu0 0.0
    %1123 = vmatprep.subr.mxu0 0.0
    %1124 = vmatpush1.msra.mxu0 0.0
    %1125 = vmatprep.subr.mxu0 0.0
    %1126 = vmatpush1.msra.mxu0 0.0
    %1127 = vmatprep.subr.mxu0 0.0
    %1128 = vmatpush1.msra.mxu0 0.0
    %1129 = vmatprep.subr.mxu0 0.0
    %1130 = vmatpush1.msra.mxu0 0.0
    %1131 = vmatprep.subr.mxu0 0.0
    %1132 = vmatpush1.msra.mxu0 0.0
    %1133 = vmatprep.subr.mxu0 0.0
    %1134 = vmatpush1.msra.mxu0 0.0
    %1135 = vmatprep.subr.mxu0 0.0
    %1136 = vmatpush1.msra.mxu0 0.0
    %1137 = vmatprep.subr.mxu0 0.0
    %1138 = vmatpush1.msra.mxu0 0.0
    %1139 = vmatprep.subr.mxu0 0.0
    %1140 = vmatpush1.msra.mxu0 0.0
    %1141 = vmatprep.subr.mxu0 0.0
    %1142 = vmatpush1.msra.mxu0 0.0
    %1143 = vmatprep.mubr.f32.mxu0 0.0
    %1144 = vmatmul.mubr.f32.gmra.mrb[0].mxu0 %v1077
    %v1145 = vpop.f32.mrb[0].mxu0
    %v1146 = vadd.f32 0.0, %v1145
    %v1147 = vpop.f32.mrb[0].mxu0
    %1148 = vdwg.mxu0
    %v1149 = vadd.f32 %v1073, %v1146
    %v1150 = vmul.f32 %v1149, %v240
    %v1151 = vxor.u32 %v1150, 2147483648
    %v1152 = vmul.f32 %v1151, 1.442695
    %v1153 = vpow.pop %v1152
    %v1154 = vadd.f32 %v1153, 1.0
    %v1155 = vrcp.pop %v1154
    %v1156 = vmul.f32 1.0, %v1155
    %v1157 = vmul.f32 %v1156, 2.0
    %v1158 = vsub.f32 %v1157, 1.0
    %v1159 = vsel %vm239, %v1158, %v1156
    %v1160 = vmul.f32 %v1159, %v1053
    %1162 = vrot.lane.b32.xlu0 %v1159, 64
    %v1163 = vpop.permute.xlu0 %1162
    %v1165 = vmul.f32 %v1159, %v1163
    %1167 = vrot.lane.b32.xlu0 %v1165, 32
    %v1168 = vpop.permute.xlu0 %1167
    %v1170 = vadd.f32 %v1160, %v1168
    %v1171 = vtanh.pop %v1170
    %1173 = vrot.lane.b32.xlu0 %v1171, 64
    %v1174 = vpop.permute.xlu0 %1173
    %v1176 = vmul.f32 %v1159, %v1174
    %v1177 = vmax.f32 %v1176, 0.0
    %v1178 = vmin.f32 %v1177, 6.0
    %v1179 = vmul.f32 %v1178, %v358
    %1181 = vrot.lane.b32.xlu0 %v1179, 32
    %v1182 = vpop.permute.xlu0 %1181
    %v1184 = vsel %vm244, %v1182, 0.0
    %1185 = vadd.xlane.f32.xlu0 %v1184
    %v1186 = vpop.xlane.xlu0 %1185
    %vm1187 = vcmp.eq.s32.totalorder %v236, 7
    %v1188 = vsel %vm1187, %v1186, %v1071
    %1190 = vrot.lane.b32.xlu0 %v1176, 32
    %v1191 = vpop.permute.xlu0 %1190
    %1193 = vst.msk [vmem:[#allocation2] sm:$0xff] %vm244, %v1191
    %1195 = vrot.lane.b32.xlu0 %v1170, 96
    %v1196 = vpop.permute.xlu0 %1195
    %1198 = vst.msk [vmem:[#allocation3] sm:$0xff] %vm244, %v1196
    %vm1199 = vcmask 64512
    %1200 = vst.msk [vmem:[#allocation11] sm:$0xff] %vm1199, %v1188
    // Predicated region
    $region34: #{tpu_custom_call.1} parent=1 // pred_check
      _
    $region35: #{tpu_custom_call.1} parent=1 // pred_check_branch
      %1202 = sbr.rel (0) target = $region37
    $region36: #{tpu_custom_call.1} parent=1 // pred_region
      %s1204 = ssub.s32 128, 128
      %1205 = vsyncadd [#allocation7], %s1204
      %s1207 = sshll.u32 [#allocation11], 4
      %s1208 = int_to_ptr.vmem [resolvable:$true] %s1207
      %1210 = dma.vmem_to_hbm [thread:$0]  %s1208, 128, %s4, [#allocation7]
    $region37: #{tpu_custom_call.1} parent=1 // pred_fallthru
      _
    // Predicated region
    $region38: #{tpu_custom_call.1} parent=1 // pred_check
      _
    $region39: #{tpu_custom_call.1} parent=1 // pred_check_branch
      %1212 = sbr.rel (0) target = $region41
    $region40: #{tpu_custom_call.1} parent=1 // pred_region
      %1213 = dma.done [#allocation7], 128
    $region41: #{tpu_custom_call.1} parent=1 // pred_fallthru
      _
    %1214 = vsyncpa [#allocation6], 1
    %1215 = vsyncpa [#allocation9], 1
    %1216 = vsyncpa [#allocation7], 1

</llo_original>
